<compile_context>
chip_gen: v6e
topology: v6e:2x2x1
jax: 0.10.0
libtpu: 0.0.40
codegen_flags: <defaults>
</compile_context>

<pallas_src>
import functools

import jax
import jax.numpy as jnp
from jax import lax
from jax.experimental import pallas as pl
from jax.experimental.pallas import tpu as pltpu


def _round_up(x, m):
    return (x + m - 1) // m * m


def _atrous_sep_conv_kernel(xp_hbm, wdw_ref, wpw_ref, bpw_ref, o_ref,
                            xbuf, sem, *, kh_size, kw_size, stride, dilation,
                            th, th_in, wo, mxu_dtype):
    # xp_hbm : (N, Hp, Wp, Cp)    zero-padded input, resident in HBM (pl.ANY)
    # wdw_ref: (KH, KW, Cp)       depthwise weights (channel-padded)
    # wpw_ref: (Cp, Cop)          pointwise (1x1) weights (channel-padded)
    # bpw_ref: (1, Cop)           fused bias  (b_pw + b_dw @ W_pw)
    # o_ref  : (1, TH*Wo, Cop)    lane-dense output tile
    # xbuf   : (2, TH_in, Wp, Cp) VMEM double buffer for the input row window
    # sem    : (2,)               DMA completion semaphores
    b = pl.program_id(0)
    i = pl.program_id(1)
    nt = pl.num_programs(1)
    slot = i % 2

    def in_copy(tile, slot_):
        row0 = tile * (th * stride)
        return pltpu.make_async_copy(
            xp_hbm.at[b, pl.ds(row0, th_in), :, :],
            xbuf.at[slot_],
            sem.at[slot_])

    # First row tile of each batch image: issue its own fetch (not hidden).
    @pl.when(i == 0)
    def _():
        in_copy(i, slot).start()

    # Wait for the current tile's input window (prefetched by the previous
    # step for i > 0).
    in_copy(i, slot).wait()

    # Prefetch the next row tile into the other slot (hidden behind compute).
    @pl.when(i + 1 < nt)
    def _():
        in_copy(i + 1, 1 - slot).start()

    cp = xbuf.shape[-1]

    # Depthwise atrous convolution: statically unrolled over the small kernel,
    # per-tap ref slices, f32 accumulation.
    wdw = wdw_ref[...].astype(jnp.float32)            # (KH, KW, Cp), cast once
    acc = jnp.zeros((th, wo, cp), jnp.float32)
    for kh_i in range(kh_size):
        h0 = kh_i * dilation
        r = slice(h0, h0 + th) if stride == 1 else pl.ds(h0, th, stride)
        for kw_i in range(kw_size):
            w0 = kw_i * dilation
            c = slice(w0, w0 + wo) if stride == 1 else pl.ds(w0, wo, stride)
            patch = xbuf[slot, r, c, :].astype(jnp.float32)   # (TH, Wo, Cp)
            acc = acc + patch * wdw[kh_i, kw_i, :]

    # Pointwise 1x1 convolution = (TH*Wo, Cp) x (Cp, Cop) matmul on the MXU.
    flat = acc.reshape(th * wo, cp)
    w_pw = wpw_ref[...]
    if mxu_dtype is not None:   # e.g. bf16 operands for realistic Cin/Cout
        flat = flat.astype(mxu_dtype)
        w_pw = w_pw.astype(mxu_dtype)
    out = jnp.dot(flat, w_pw, preferred_element_type=jnp.float32)
    out = out + bpw_ref[0].astype(jnp.float32)
    o_ref[0] = out.astype(o_ref.dtype)


def atrous_separable_convolution(x_nchw, w_dw, b_dw, w_pw, b_pw, *,
                                 stride=1, padding=0, dilation=1,
                                 row_tile=8, mxu_dtype=None):
    """Forward pass matching the PyTorch AtrousSeparableConvolution.

    x_nchw: (N, Cin, H, W)
    w_dw  : (Cin, 1, KH, KW)   depthwise conv weight (groups=Cin)
    b_dw  : (Cin,)
    w_pw  : (Cout, Cin, 1, 1)  pointwise conv weight
    b_pw  : (Cout,)
    mxu_dtype: set to jnp.bfloat16 for realistic (>=128) channel counts to get
               full-rate MXU; kept None (input dtype) here for tight tolerance.
    returns: (N, Cout, Ho, Wo)
    """
    n, cin, h, w = x_nchw.shape
    cout = w_pw.shape[0]
    kh, kw = int(w_dw.shape[2]), int(w_dw.shape[3])

    ho = (h + 2 * padding - dilation * (kh - 1) - 1) // stride + 1
    wo = (w + 2 * padding - dilation * (kw - 1) - 1) // stride + 1

    # Lane-dense channel padding (multiples of 128; no-op for realistic sizes).
    cp = _round_up(cin, 128)
    cop = _round_up(cout, 128)

    # Row-tile size: TH output rows per grid step; TH*Wo must be a multiple of
    # 8 so the (1, TH*Wo, Cop) output block is sublane/lane aligned.
    th = min(row_tile, ho)
    while (th * wo) % 8 != 0:
        th += 1
    nt = pl.cdiv(ho, th)
    th_in = (th - 1) * stride + dilation * (kh - 1) + 1   # input rows w/ halo

    hp_nat = h + 2 * padding
    wp = w + 2 * padding
    hp_req = (nt - 1) * th * stride + th_in    # last tile's window must exist
    extra_rows = max(0, hp_req - hp_nat)
    hp = hp_nat + extra_rows

    # Glue (single fused pad): NCHW -> NHWC, zero-pad spatial dims, pad the
    # channel dim up to Cp and the row tail so every tile window is in-bounds.
    # TODO(synk): fuse the NCHW->NHWC transpose into the producer when this is
    # embedded in a full network (here it is one extra XLA transpose+pad).
    x_nhwc = jnp.transpose(x_nchw, (0, 2, 3, 1))
    xp = jnp.pad(x_nhwc, ((0, 0),
                          (padding, padding + extra_rows),
                          (padding, padding),
                          (0, cp - cin)))
    assert xp.shape == (n, hp, wp, cp)

    f32 = jnp.float32
    # Depthwise weights -> (KH, KW, Cp); pointwise -> (Cp, Cop).
    wdw_k = jnp.pad(jnp.transpose(w_dw[:, 0, :, :], (1, 2, 0)).astype(f32),
                    ((0, 0), (0, 0), (0, cp - cin)))
    wpw_k = jnp.pad(jnp.transpose(w_pw[:, :, 0, 0], (1, 0)).astype(f32),
                    ((0, cp - cin), (0, cop - cout)))
    # Fold the depthwise bias through the (linear) pointwise conv:
    #   (y + b_dw) @ W + b_pw == y @ W + (b_dw @ W + b_pw)
    bdw_p = jnp.pad(b_dw.astype(f32), (0, cp - cin))
    bpw_p = jnp.pad(b_pw.astype(f32), (0, cop - cout))
    bpw_k = (bpw_p + bdw_p @ wpw_k).reshape(1, cop)

    mt = th * wo                      # output rows per tile (lane-dense block)
    itemsize = jnp.dtype(x_nchw.dtype).itemsize

    kernel = functools.partial(
        _atrous_sep_conv_kernel,
        kh_size=kh, kw_size=kw, stride=stride, dilation=dilation,
        th=th, th_in=th_in, wo=wo, mxu_dtype=mxu_dtype)

    # VMEM budget derived from the tile arithmetic (keeps v7x's 64 MiB in mind).
    xbuf_bytes = 2 * th_in * wp * cp * itemsize          # manual double buffer
    out_bytes = 2 * mt * cop * itemsize                  # pipelined output
    wt_bytes = (kh * kw * cp + cp * cop + cop) * 4       # resident weights
    acc_bytes = mt * cp * 4                              # f32 accumulator
    vmem_limit = int(min(100 * 2**20,
                         max(16 * 2**20,
                             2 * (xbuf_bytes + out_bytes + wt_bytes + acc_bytes)
                             + (2 << 20))))

    cost = pl.CostEstimate(
        flops=int(2 * n * ho * wo * cin * (kh * kw + cout)),
        transcendentals=0,
        bytes_accessed=int((x_nchw.size + n * ho * wo * cout
                            + w_dw.size + w_pw.size + b_dw.size + b_pw.size)
                           * itemsize))

    out_flat = pl.pallas_call(
        kernel,
        out_shape=jax.ShapeDtypeStruct((n, nt * mt, cop), x_nchw.dtype),
        grid_spec=pltpu.PrefetchScalarGridSpec(
            num_scalar_prefetch=0,
            grid=(n, nt),
            in_specs=[
                pl.BlockSpec(memory_space=pl.ANY),                   # input, HBM
                pl.BlockSpec((kh, kw, cp), lambda b, i: (0, 0, 0)),  # dw weights
                pl.BlockSpec((cp, cop), lambda b, i: (0, 0)),        # pw weights
                pl.BlockSpec((1, cop), lambda b, i: (0, 0)),         # fused bias
            ],
            out_specs=pl.BlockSpec((1, mt, cop), lambda b, i: (b, i, 0)),
            scratch_shapes=[
                pltpu.VMEM((2, th_in, wp, cp), xp.dtype),
                pltpu.SemaphoreType.DMA((2,)),
            ]),
        compiler_params=pltpu.CompilerParams(
            dimension_semantics=("parallel", "arbitrary"),
            vmem_limit_bytes=vmem_limit),
        cost_estimate=cost,
    )(xp, wdw_k, wpw_k, bpw_k)

    # Un-flatten the lane-dense output, drop row/channel padding, back to NCHW.
    out = out_flat.reshape(n, nt * th, wo, cop)[:, :ho, :, :cout]
    return jnp.transpose(out, (0, 3, 1, 2))


def _reference(x_nchw, w_dw, b_dw, w_pw, b_pw, *, stride, padding, dilation):
    """Pure-JAX reference via lax.conv_general_dilated (NCHW, like PyTorch)."""
    cin = x_nchw.shape[1]
    dn = ("NCHW", "OIHW", "NCHW")
    y = lax.conv_general_dilated(
        x_nchw, w_dw,
        window_strides=(stride, stride),
        padding=[(padding, padding), (padding, padding)],
        rhs_dilation=(dilation, dilation),
        dimension_numbers=dn,
        feature_group_count=cin)
    y = y + b_dw.reshape(1, cin, 1, 1)
    z = lax.conv_general_dilated(
        y, w_pw,
        window_strides=(1, 1),
        padding=[(0, 0), (0, 0)],
        dimension_numbers=dn)
    z = z + b_pw.reshape(1, -1, 1, 1)
    return z


if __name__ == "__main__":
    # Module hyper-parameters (small, consistent with the PyTorch __init__).
    in_channels = 4
    out_channels = 8
    kernel_size = 3
    stride = 1
    padding = 2
    dilation = 2

    key = jax.random.PRNGKey(0)
    k_x, k_wdw, k_bdw, k_wpw, k_bpw = jax.random.split(key, 5)

    x = jax.random.normal(k_x, (2, in_channels, 16, 16), dtype=jnp.float32)

    fan_in_dw = 1 * kernel_size * kernel_size  # groups=Cin -> Cin/groups = 1
    w_dw = jax.random.normal(
        k_wdw, (in_channels, 1, kernel_size, kernel_size),
        dtype=jnp.float32) * jnp.sqrt(2.0 / fan_in_dw)
    b_dw = (jax.random.uniform(k_bdw, (in_channels,), dtype=jnp.float32) - 0.5) \
        * 2.0 / jnp.sqrt(fan_in_dw)

    fan_in_pw = in_channels * 1 * 1
    w_pw = jax.random.normal(
        k_wpw, (out_channels, in_channels, 1, 1),
        dtype=jnp.float32) * jnp.sqrt(2.0 / fan_in_pw)
    b_pw = (jax.random.uniform(k_bpw, (out_channels,), dtype=jnp.float32) - 0.5) \
        * 2.0 / jnp.sqrt(fan_in_pw)

    out = atrous_separable_convolution(
        x, w_dw, b_dw, w_pw, b_pw,
        stride=stride, padding=padding, dilation=dilation)
    out = jax.block_until_ready(out)

    ref = _reference(x, w_dw, b_dw, w_pw, b_pw,
                     stride=stride, padding=padding, dilation=dilation)
    ref = jax.block_until_ready(ref)

    assert out.shape == ref.shape, (out.shape, ref.shape)
    assert jnp.allclose(out, ref, atol=1e-4, rtol=1e-4), \
        float(jnp.max(jnp.abs(out - ref)))

    print("KERNEL_OK")
</pallas_src>

<mosaic_0001>
module attributes {stable_mosaic.version = 11 : i64} {
  func.func @_atrous_sep_conv_kernel(%arg0: i32, %arg1: i32, %arg2: memref<2x20x20x128xf32, #tpu.memory_space<any>>, %arg3: memref<3x3x128xf32, #tpu.memory_space<vmem>>, %arg4: memref<128x128xf32, #tpu.memory_space<vmem>>, %arg5: memref<1x128xf32, #tpu.memory_space<vmem>>, %arg6: memref<1x128x128xf32, #tpu.memory_space<vmem>>, %arg7: memref<2x12x20x128xf32, #tpu.memory_space<vmem>>, %arg8: memref<2x!tpu.dma_semaphore, #tpu.memory_space<semaphore_mem>>) attributes {dimension_semantics = [#tpu.dimension_semantics<parallel>, #tpu.dimension_semantics<arbitrary>], iteration_bounds = array<i64: 2, 2>, scalar_prefetch = 0 : i64, scratch_operands = 2 : i64, tpu.core_type = #tpu.core_type<tc>, window_params = [{}, {pipeline_mode = #tpu.pipeline_mode<synchronous>, transform_indices = @transform_1, window_bounds = array<i64: 3, 3, 128>}, {pipeline_mode = #tpu.pipeline_mode<synchronous>, transform_indices = @transform_2, window_bounds = array<i64: 128, 128>}, {pipeline_mode = #tpu.pipeline_mode<synchronous>, transform_indices = @transform_3, window_bounds = array<i64: 1, 128>}, {transform_indices = @transform_4, window_bounds = array<i64: 1, 128, 128>}]} {
    %c2_i32 = arith.constant 2 : i32
    %c0_i32 = arith.constant 0 : i32
    %0 = arith.cmpi eq, %c2_i32, %c0_i32 : i32
    %c1_i32 = arith.constant 1 : i32
    %1 = arith.select %0, %c1_i32, %c2_i32 : i32
    %2 = arith.remsi %arg1, %1 : i32
    %c0_i32_0 = arith.constant 0 : i32
    %3 = arith.cmpi ne, %2, %c0_i32_0 : i32
    %c0_i32_1 = arith.constant 0 : i32
    %4 = arith.cmpi slt, %2, %c0_i32_1 : i32
    %c0_i32_2 = arith.constant 0 : i32
    %5 = arith.cmpi slt, %1, %c0_i32_2 : i32
    %6 = arith.xori %4, %5 : i1
    %7 = arith.andi %6, %3 : i1
    %8 = arith.addi %2, %1 : i32
    %9 = arith.select %7, %8, %2 : i32
    %c0_i32_3 = arith.constant 0 : i32
    %10 = arith.cmpi eq, %arg1, %c0_i32_3 : i32
    %11 = arith.extui %10 : i1 to i32
    %c0_i32_4 = arith.constant 0 : i32
    %12 = arith.cmpi ne, %11, %c0_i32_4 : i32
    scf.if %12 {
      %c8_i32_48 = arith.constant 8 : i32
      %118 = arith.muli %arg1, %c8_i32_48 : i32
      %c0_i32_49 = arith.constant 0 : i32
      %c0_i32_50 = arith.constant 0 : i32
      %119 = tpu.memref_slice %arg2[%arg0, %118, %c0_i32_49, %c0_i32_50] : memref<2x20x20x128xf32, #tpu.memory_space<any>> -> memref<1x12x20x128xf32, #tpu.memory_space<any>>
      %120 = tpu.memref_squeeze %119 : memref<1x12x20x128xf32, #tpu.memory_space<any>> -> memref<12x20x128xf32, #tpu.memory_space<any>>
      %c0_i32_51 = arith.constant 0 : i32
      %c0_i32_52 = arith.constant 0 : i32
      %c0_i32_53 = arith.constant 0 : i32
      %121 = tpu.memref_slice %arg7[%9, %c0_i32_51, %c0_i32_52, %c0_i32_53] : memref<2x12x20x128xf32, #tpu.memory_space<vmem>> -> memref<1x12x20x128xf32, #tpu.memory_space<vmem>>
      %122 = tpu.memref_squeeze %121 : memref<1x12x20x128xf32, #tpu.memory_space<vmem>> -> memref<12x20x128xf32, #tpu.memory_space<vmem>>
      %123 = tpu.memref_slice %arg8[%9] : memref<2x!tpu.dma_semaphore, #tpu.memory_space<semaphore_mem>> -> memref<1x!tpu.dma_semaphore, #tpu.memory_space<semaphore_mem>>
      %124 = tpu.memref_squeeze %123 : memref<1x!tpu.dma_semaphore, #tpu.memory_space<semaphore_mem>> -> memref<!tpu.dma_semaphore, #tpu.memory_space<semaphore_mem>>
      tpu.enqueue_dma source(%120 : memref<12x20x128xf32, #tpu.memory_space<any>>) target(%122 : memref<12x20x128xf32, #tpu.memory_space<vmem>>) target_semaphore(%124 : memref<!tpu.dma_semaphore, #tpu.memory_space<semaphore_mem>>)
    } else {
    }
    %c8_i32 = arith.constant 8 : i32
    %13 = arith.muli %arg1, %c8_i32 : i32
    %c0_i32_5 = arith.constant 0 : i32
    %c0_i32_6 = arith.constant 0 : i32
    %14 = tpu.memref_slice %arg2[%arg0, %13, %c0_i32_5, %c0_i32_6] : memref<2x20x20x128xf32, #tpu.memory_space<any>> -> memref<1x12x20x128xf32, #tpu.memory_space<any>>
    %15 = tpu.memref_squeeze %14 : memref<1x12x20x128xf32, #tpu.memory_space<any>> -> memref<12x20x128xf32, #tpu.memory_space<any>>
    %c0_i32_7 = arith.constant 0 : i32
    %c0_i32_8 = arith.constant 0 : i32
    %c0_i32_9 = arith.constant 0 : i32
    %16 = tpu.memref_slice %arg7[%9, %c0_i32_7, %c0_i32_8, %c0_i32_9] : memref<2x12x20x128xf32, #tpu.memory_space<vmem>> -> memref<1x12x20x128xf32, #tpu.memory_space<vmem>>
    %17 = tpu.memref_squeeze %16 : memref<1x12x20x128xf32, #tpu.memory_space<vmem>> -> memref<12x20x128xf32, #tpu.memory_space<vmem>>
    %18 = tpu.memref_slice %arg8[%9] : memref<2x!tpu.dma_semaphore, #tpu.memory_space<semaphore_mem>> -> memref<1x!tpu.dma_semaphore, #tpu.memory_space<semaphore_mem>>
    %19 = tpu.memref_squeeze %18 : memref<1x!tpu.dma_semaphore, #tpu.memory_space<semaphore_mem>> -> memref<!tpu.dma_semaphore, #tpu.memory_space<semaphore_mem>>
    tpu.wait_dma2 semaphore(%19 : memref<!tpu.dma_semaphore, #tpu.memory_space<semaphore_mem>>) src(%15 : memref<12x20x128xf32, #tpu.memory_space<any>>) dst(%17 : memref<12x20x128xf32, #tpu.memory_space<vmem>>)
    %c1_i32_10 = arith.constant 1 : i32
    %20 = arith.addi %arg1, %c1_i32_10 : i32
    %c2_i32_11 = arith.constant 2 : i32
    %21 = arith.cmpi slt, %20, %c2_i32_11 : i32
    %22 = arith.extui %21 : i1 to i32
    %c0_i32_12 = arith.constant 0 : i32
    %23 = arith.cmpi ne, %22, %c0_i32_12 : i32
    scf.if %23 {
      %c1_i32_48 = arith.constant 1 : i32
      %118 = arith.addi %arg1, %c1_i32_48 : i32
      %c1_i32_49 = arith.constant 1 : i32
      %119 = arith.subi %c1_i32_49, %9 : i32
      %c8_i32_50 = arith.constant 8 : i32
      %120 = arith.muli %118, %c8_i32_50 : i32
      %c0_i32_51 = arith.constant 0 : i32
      %c0_i32_52 = arith.constant 0 : i32
      %121 = tpu.memref_slice %arg2[%arg0, %120, %c0_i32_51, %c0_i32_52] : memref<2x20x20x128xf32, #tpu.memory_space<any>> -> memref<1x12x20x128xf32, #tpu.memory_space<any>>
      %122 = tpu.memref_squeeze %121 : memref<1x12x20x128xf32, #tpu.memory_space<any>> -> memref<12x20x128xf32, #tpu.memory_space<any>>
      %c0_i32_53 = arith.constant 0 : i32
      %c0_i32_54 = arith.constant 0 : i32
      %c0_i32_55 = arith.constant 0 : i32
      %123 = tpu.memref_slice %arg7[%119, %c0_i32_53, %c0_i32_54, %c0_i32_55] : memref<2x12x20x128xf32, #tpu.memory_space<vmem>> -> memref<1x12x20x128xf32, #tpu.memory_space<vmem>>
      %124 = tpu.memref_squeeze %123 : memref<1x12x20x128xf32, #tpu.memory_space<vmem>> -> memref<12x20x128xf32, #tpu.memory_space<vmem>>
      %125 = tpu.memref_slice %arg8[%119] : memref<2x!tpu.dma_semaphore, #tpu.memory_space<semaphore_mem>> -> memref<1x!tpu.dma_semaphore, #tpu.memory_space<semaphore_mem>>
      %126 = tpu.memref_squeeze %125 : memref<1x!tpu.dma_semaphore, #tpu.memory_space<semaphore_mem>> -> memref<!tpu.dma_semaphore, #tpu.memory_space<semaphore_mem>>
      tpu.enqueue_dma source(%122 : memref<12x20x128xf32, #tpu.memory_space<any>>) target(%124 : memref<12x20x128xf32, #tpu.memory_space<vmem>>) target_semaphore(%126 : memref<!tpu.dma_semaphore, #tpu.memory_space<semaphore_mem>>)
    } else {
    }
    %c0 = arith.constant 0 : index
    %c0_13 = arith.constant 0 : index
    %c0_14 = arith.constant 0 : index
    %24 = vector.load %arg3[%c0, %c0_13, %c0_14] : memref<3x3x128xf32, #tpu.memory_space<vmem>>, vector<3x3x128xf32>
    %cst = arith.constant 0.000000e+00 : f32
    %25 = vector.broadcast %cst : f32 to vector<8x16x128xf32>
    %26 = arith.index_cast %9 : i32 to index
    %c0_15 = arith.constant 0 : index
    %c0_16 = arith.constant 0 : index
    %c0_17 = arith.constant 0 : index
    %27 = vector.load %arg7[%26, %c0_15, %c0_16, %c0_17] : memref<2x12x20x128xf32, #tpu.memory_space<vmem>>, vector<1x8x16x128xf32>
    %28 = vector.shape_cast %27 : vector<1x8x16x128xf32> to vector<8x16x128xf32>
    %29 = vector.extract_strided_slice %24 {offsets = [0, 0, 0], sizes = [1, 1, 128], strides = [1, 1, 1]} : vector<3x3x128xf32> to vector<1x1x128xf32>
    %30 = vector.shape_cast %29 : vector<1x1x128xf32> to vector<128xf32>
    %31 = vector.shape_cast %30 : vector<128xf32> to vector<1x1x128xf32>
    %32 = vector.broadcast %31 : vector<1x1x128xf32> to vector<8x16x128xf32>
    %33 = arith.mulf %28, %32 : vector<8x16x128xf32>
    %34 = arith.addf %25, %33 : vector<8x16x128xf32>
    %35 = arith.index_cast %9 : i32 to index
    %c0_18 = arith.constant 0 : index
    %c2 = arith.constant 2 : index
    %c0_19 = arith.constant 0 : index
    %36 = vector.load %arg7[%35, %c0_18, %c2, %c0_19] : memref<2x12x20x128xf32, #tpu.memory_space<vmem>>, vector<1x8x16x128xf32>
    %37 = vector.shape_cast %36 : vector<1x8x16x128xf32> to vector<8x16x128xf32>
    %38 = vector.extract_strided_slice %24 {offsets = [0, 1, 0], sizes = [1, 1, 128], strides = [1, 1, 1]} : vector<3x3x128xf32> to vector<1x1x128xf32>
    %39 = vector.shape_cast %38 : vector<1x1x128xf32> to vector<128xf32>
    %40 = vector.shape_cast %39 : vector<128xf32> to vector<1x1x128xf32>
    %41 = vector.broadcast %40 : vector<1x1x128xf32> to vector<8x16x128xf32>
    %42 = arith.mulf %37, %41 : vector<8x16x128xf32>
    %43 = arith.addf %34, %42 : vector<8x16x128xf32>
    %44 = arith.index_cast %9 : i32 to index
    %c0_20 = arith.constant 0 : index
    %c4 = arith.constant 4 : index
    %c0_21 = arith.constant 0 : index
    %45 = vector.load %arg7[%44, %c0_20, %c4, %c0_21] : memref<2x12x20x128xf32, #tpu.memory_space<vmem>>, vector<1x8x16x128xf32>
    %46 = vector.shape_cast %45 : vector<1x8x16x128xf32> to vector<8x16x128xf32>
    %47 = vector.extract_strided_slice %24 {offsets = [0, 2, 0], sizes = [1, 1, 128], strides = [1, 1, 1]} : vector<3x3x128xf32> to vector<1x1x128xf32>
    %48 = vector.shape_cast %47 : vector<1x1x128xf32> to vector<128xf32>
    %49 = vector.shape_cast %48 : vector<128xf32> to vector<1x1x128xf32>
    %50 = vector.broadcast %49 : vector<1x1x128xf32> to vector<8x16x128xf32>
    %51 = arith.mulf %46, %50 : vector<8x16x128xf32>
    %52 = arith.addf %43, %51 : vector<8x16x128xf32>
    %53 = arith.index_cast %9 : i32 to index
    %c2_22 = arith.constant 2 : index
    %c0_23 = arith.constant 0 : index
    %c0_24 = arith.constant 0 : index
    %54 = vector.load %arg7[%53, %c2_22, %c0_23, %c0_24] : memref<2x12x20x128xf32, #tpu.memory_space<vmem>>, vector<1x8x16x128xf32>
    %55 = vector.shape_cast %54 : vector<1x8x16x128xf32> to vector<8x16x128xf32>
    %56 = vector.extract_strided_slice %24 {offsets = [1, 0, 0], sizes = [1, 1, 128], strides = [1, 1, 1]} : vector<3x3x128xf32> to vector<1x1x128xf32>
    %57 = vector.shape_cast %56 : vector<1x1x128xf32> to vector<128xf32>
    %58 = vector.shape_cast %57 : vector<128xf32> to vector<1x1x128xf32>
    %59 = vector.broadcast %58 : vector<1x1x128xf32> to vector<8x16x128xf32>
    %60 = arith.mulf %55, %59 : vector<8x16x128xf32>
    %61 = arith.addf %52, %60 : vector<8x16x128xf32>
    %62 = arith.index_cast %9 : i32 to index
    %c2_25 = arith.constant 2 : index
    %c2_26 = arith.constant 2 : index
    %c0_27 = arith.constant 0 : index
    %63 = vector.load %arg7[%62, %c2_25, %c2_26, %c0_27] : memref<2x12x20x128xf32, #tpu.memory_space<vmem>>, vector<1x8x16x128xf32>
    %64 = vector.shape_cast %63 : vector<1x8x16x128xf32> to vector<8x16x128xf32>
    %65 = vector.extract_strided_slice %24 {offsets = [1, 1, 0], sizes = [1, 1, 128], strides = [1, 1, 1]} : vector<3x3x128xf32> to vector<1x1x128xf32>
    %66 = vector.shape_cast %65 : vector<1x1x128xf32> to vector<128xf32>
    %67 = vector.shape_cast %66 : vector<128xf32> to vector<1x1x128xf32>
    %68 = vector.broadcast %67 : vector<1x1x128xf32> to vector<8x16x128xf32>
    %69 = arith.mulf %64, %68 : vector<8x16x128xf32>
    %70 = arith.addf %61, %69 : vector<8x16x128xf32>
    %71 = arith.index_cast %9 : i32 to index
    %c2_28 = arith.constant 2 : index
    %c4_29 = arith.constant 4 : index
    %c0_30 = arith.constant 0 : index
    %72 = vector.load %arg7[%71, %c2_28, %c4_29, %c0_30] : memref<2x12x20x128xf32, #tpu.memory_space<vmem>>, vector<1x8x16x128xf32>
    %73 = vector.shape_cast %72 : vector<1x8x16x128xf32> to vector<8x16x128xf32>
    %74 = vector.extract_strided_slice %24 {offsets = [1, 2, 0], sizes = [1, 1, 128], strides = [1, 1, 1]} : vector<3x3x128xf32> to vector<1x1x128xf32>
    %75 = vector.shape_cast %74 : vector<1x1x128xf32> to vector<128xf32>
    %76 = vector.shape_cast %75 : vector<128xf32> to vector<1x1x128xf32>
    %77 = vector.broadcast %76 : vector<1x1x128xf32> to vector<8x16x128xf32>
    %78 = arith.mulf %73, %77 : vector<8x16x128xf32>
    %79 = arith.addf %70, %78 : vector<8x16x128xf32>
    %80 = arith.index_cast %9 : i32 to index
    %c4_31 = arith.constant 4 : index
    %c0_32 = arith.constant 0 : index
    %c0_33 = arith.constant 0 : index
    %81 = vector.load %arg7[%80, %c4_31, %c0_32, %c0_33] : memref<2x12x20x128xf32, #tpu.memory_space<vmem>>, vector<1x8x16x128xf32>
    %82 = vector.shape_cast %81 : vector<1x8x16x128xf32> to vector<8x16x128xf32>
    %83 = vector.extract_strided_slice %24 {offsets = [2, 0, 0], sizes = [1, 1, 128], strides = [1, 1, 1]} : vector<3x3x128xf32> to vector<1x1x128xf32>
    %84 = vector.shape_cast %83 : vector<1x1x128xf32> to vector<128xf32>
    %85 = vector.shape_cast %84 : vector<128xf32> to vector<1x1x128xf32>
    %86 = vector.broadcast %85 : vector<1x1x128xf32> to vector<8x16x128xf32>
    %87 = arith.mulf %82, %86 : vector<8x16x128xf32>
    %88 = arith.addf %79, %87 : vector<8x16x128xf32>
    %89 = arith.index_cast %9 : i32 to index
    %c4_34 = arith.constant 4 : index
    %c2_35 = arith.constant 2 : index
    %c0_36 = arith.constant 0 : index
    %90 = vector.load %arg7[%89, %c4_34, %c2_35, %c0_36] : memref<2x12x20x128xf32, #tpu.memory_space<vmem>>, vector<1x8x16x128xf32>
    %91 = vector.shape_cast %90 : vector<1x8x16x128xf32> to vector<8x16x128xf32>
    %92 = vector.extract_strided_slice %24 {offsets = [2, 1, 0], sizes = [1, 1, 128], strides = [1, 1, 1]} : vector<3x3x128xf32> to vector<1x1x128xf32>
    %93 = vector.shape_cast %92 : vector<1x1x128xf32> to vector<128xf32>
    %94 = vector.shape_cast %93 : vector<128xf32> to vector<1x1x128xf32>
    %95 = vector.broadcast %94 : vector<1x1x128xf32> to vector<8x16x128xf32>
    %96 = arith.mulf %91, %95 : vector<8x16x128xf32>
    %97 = arith.addf %88, %96 : vector<8x16x128xf32>
    %98 = arith.index_cast %9 : i32 to index
    %c4_37 = arith.constant 4 : index
    %c4_38 = arith.constant 4 : index
    %c0_39 = arith.constant 0 : index
    %99 = vector.load %arg7[%98, %c4_37, %c4_38, %c0_39] : memref<2x12x20x128xf32, #tpu.memory_space<vmem>>, vector<1x8x16x128xf32>
    %100 = vector.shape_cast %99 : vector<1x8x16x128xf32> to vector<8x16x128xf32>
    %101 = vector.extract_strided_slice %24 {offsets = [2, 2, 0], sizes = [1, 1, 128], strides = [1, 1, 1]} : vector<3x3x128xf32> to vector<1x1x128xf32>
    %102 = vector.shape_cast %101 : vector<1x1x128xf32> to vector<128xf32>
    %103 = vector.shape_cast %102 : vector<128xf32> to vector<1x1x128xf32>
    %104 = vector.broadcast %103 : vector<1x1x128xf32> to vector<8x16x128xf32>
    %105 = arith.mulf %100, %104 : vector<8x16x128xf32>
    %106 = arith.addf %97, %105 : vector<8x16x128xf32>
    %107 = vector.shape_cast %106 : vector<8x16x128xf32> to vector<128x128xf32>
    %c0_40 = arith.constant 0 : index
    %c0_41 = arith.constant 0 : index
    %108 = vector.load %arg4[%c0_40, %c0_41] : memref<128x128xf32, #tpu.memory_space<vmem>>, vector<128x128xf32>
    %cst_42 = arith.constant dense<0.000000e+00> : vector<128x128xf32>
    %109 = tpu.matmul %107, %108, %cst_42 {dimension_numbers = #tpu.dot_dimension_numbers<[1], [0], [0], [1], [0, 0, 1, 1], [], []>} : vector<128x128xf32>, vector<128x128xf32>, vector<128x128xf32> -> vector<128x128xf32>
    %c0_43 = arith.constant 0 : index
    %c0_44 = arith.constant 0 : index
    %110 = vector.load %arg5[%c0_43, %c0_44] : memref<1x128xf32, #tpu.memory_space<vmem>>, vector<1x128xf32>
    %111 = vector.shape_cast %110 : vector<1x128xf32> to vector<128xf32>
    %112 = vector.shape_cast %111 : vector<128xf32> to vector<1x128xf32>
    %113 = vector.broadcast %112 : vector<1x128xf32> to vector<128x128xf32>
    %114 = arith.addf %109, %113 : vector<128x128xf32>
    %c0_45 = arith.constant 0 : index
    %c0_46 = arith.constant 0 : index
    %c0_47 = arith.constant 0 : index
    %115 = vector.load %arg6[%c0_45, %c0_46, %c0_47] : memref<1x128x128xf32, #tpu.memory_space<vmem>>, vector<1x128x128xf32>
    %116 = vector.shape_cast %115 : vector<1x128x128xf32> to vector<128x128xf32>
    %117 = vector.shape_cast %114 : vector<128x128xf32> to vector<1x128x128xf32>
    tpu.vector_store %arg6[%c0_45, %c0_46, %c0_47], %117 {strides = array<i32>} : memref<1x128x128xf32, #tpu.memory_space<vmem>>, vector<1x128x128xf32>,
    return
  }
  func.func @transform_1(%arg0: i32, %arg1: i32) -> (i32, i32, i32) {
    %c0_i32 = arith.constant 0 : i32
    %c0_i32_0 = arith.constant 0 : i32
    %c0_i32_1 = arith.constant 0 : i32
    %c0_i32_2 = arith.constant 0 : i32
    return %c0_i32, %c0_i32_0, %c0_i32_1 : i32, i32, i32
  }
  func.func @transform_2(%arg0: i32, %arg1: i32) -> (i32, i32) {
    %c0_i32 = arith.constant 0 : i32
    %c0_i32_0 = arith.constant 0 : i32
    %c0_i32_1 = arith.constant 0 : i32
    return %c0_i32, %c0_i32_0 : i32, i32
  }
  func.func @transform_3(%arg0: i32, %arg1: i32) -> (i32, i32) {
    %c0_i32 = arith.constant 0 : i32
    %c0_i32_0 = arith.constant 0 : i32
    %c0_i32_1 = arith.constant 0 : i32
    return %c0_i32, %c0_i32_0 : i32, i32
  }
  func.func @transform_4(%arg0: i32, %arg1: i32) -> (i32, i32, i32) {
    %c0_i32 = arith.constant 0 : i32
    %c0_i32_0 = arith.constant 0 : i32
    return %arg0, %arg1, %c0_i32 : i32, i32, i32
  }
}

</mosaic_0001>

<llo_original>
// kernel: tpu_custom_call.1
$region0: #{tpu_custom_call.1}
  #allocation0 [shape = 'u32[]', space=smem, size = 0x4, offset = 0x4, fixed_abs, tag = 'smem constant byte address 0x4 - core index']
  #allocation1 [shape = 'u32[144,128]{1,0:T(1,128)}', space=vmem, size = 0x12000, scoped, tag = 'internal scratch']
  #allocation2 [shape = 'f32[2,12,20,128]{3,2,1,0:T(8,128)}', space=vmem, size = 0x48000, scoped, tag = 'scratch operand']
  #allocation3 [shape = 's32[2]{0}', space=sflag, size = 0x8, scoped, tag = 'scratch operand']
  #allocation6 [shape = 's32[]', space=sflag, size = 0x4, offset = 0, fixed_abs, tag = 'sflag constant byte address 0x0 - dummy sync flag']
  #allocation7 [shape = 's32[]', space=sflag, size = 0x4, offset = 0, fixed_abs, tag = 'sflag constant byte address 0x0 - dummy sync flag']
  %s0 = inlined_call_operand.vmem [shape: f32[2,20,20,128], index: 0, kind: input, shape index: {}]
  %s1 = inlined_call_operand.vmem [shape: f32[3,3,128], index: 1, kind: input, shape index: {}]
  %s2 = inlined_call_operand.vmem [shape: f32[128,128], index: 2, kind: input, shape index: {}]
  %s3 = inlined_call_operand.vmem [shape: f32[1,128], index: 3, kind: input, shape index: {}]
  %s4 = inlined_call_operand.hbm [shape: f32[2,256,128], index: 4, kind: output, shape index: {}]
  %s5 = sld [smem:[#allocation0]]
  $region127: #{tpu_custom_call.1} parent=0
    _
  %s7 = ssub.s32 1, %s5
  %s8 = scalar_select 0, %s7, %s5
  $region1: #{tpu_custom_call.1} parent=0
    #allocation4 [shape = 'u8[131072]{0}', space=vmem, size = 0x20000, scoped, tag = 'output window, operand 0']
    #allocation5 [shape = 's32[2]{0}', space=sflag, size = 0x8, scoped, tag = 'scoped memory for tpu_custom_call.1']
    %9 = vsyncpa [#allocation5], 0
    %s10 = scalar_lea.sflag [#allocation5], 1
    %11 = vsyncpa %s10, 0
    loop: start=0, step=1, limit=6
    $region2: #{tpu_custom_call.1} parent=1 // loop_pre_header
      _
    $region3: #{tpu_custom_call.1} parent=1 // loop_header
      %s13 = sphi 0, %s17
      %p14 = scmp.ge.s32.totalorder %s13, 6
      %s20 = sphi 0, %s32
      %s21 = sphi 0, %s28
      %s22 = sphi 0, %s20
      %s23 = sphi 0, %s21
      %s24 = sphi 0, %s22
      %s25 = sphi 0, %s23
      %s33 = sphi 0, %s33
      %s35 = sphi 0, %s33
      %s36 = sphi 0, %s35
      %s50 = sphi 0, %s36
      %s54 = sphi 0, %s54
      %s56 = sphi 0, %s54
      %s57 = sphi 0, %s56
      %s71 = sphi 0, %s57
      %s75 = sphi 0, %s75
      %s77 = sphi 0, %s75
      %s78 = sphi 0, %s77
      %s92 = sphi 0, %s78
      %s100 = sphi 0, %s102
      %s103 = sphi 0, %s100
      %s104 = sphi 0, %s103
      %s120 = sphi 0, %s104
    $region4: #{tpu_custom_call.1} parent=1 // loop_header_branch
      %16 = sbr.rel (%p14) target = $region8
    $region5: #{tpu_custom_call.1} parent=1 // loop_body
      %s18 = ssub.s32 %s13, 1
      %s19 = ssub.s32 %s13, 2
      %s26 = sadd.s32 1, %s21
      %p27 = scmp.ge.s32.totalorder %s26, 2
      %s28 = scalar_select %p27, 0, %s26
      %s29 = sadd.s32 1, %s20
      %s30 = scalar_select %p27, %s29, %s20
      %p31 = scmp.ge.s32.totalorder %s30, 2
      %s32 = scalar_select %p31, 0, %s30
      %s34 = sadd.s32 %s33, 1
      %p37 = scmp.eq.s32.totalorder %s13, 3
      %p38 = scmp.ne.s32.totalorder %s33, %s35
      %p39 = scmp.eq.s32.totalorder %s13, 0
      %p40 = por %p38, %p39
      %p41 = scmp.ne.s32.totalorder %s33, %s35
      %p42 = scmp.eq.s32.totalorder %s18, 3
      %p43 = por %p41, %p42
      %p44 = scmp.ne.s32.totalorder %s35, %s36
      %p45 = scmp.eq.s32.totalorder %s18, 0
      %p46 = por %p44, %p45
      %p47 = scmp.ne.s32.totalorder %s35, %s36
      %p48 = scmp.eq.s32.totalorder %s19, 3
      %p49 = por %p47, %p48
      %p51 = scmp.ne.s32.totalorder %s36, %s50
      %p52 = scmp.eq.s32.totalorder %s19, 0
      %p53 = por %p51, %p52
      %s55 = sadd.s32 %s54, 1
      %p58 = scmp.eq.s32.totalorder %s13, 3
      %p59 = scmp.ne.s32.totalorder %s54, %s56
      %p60 = scmp.eq.s32.totalorder %s13, 0
      %p61 = por %p59, %p60
      %p62 = scmp.ne.s32.totalorder %s54, %s56
      %p63 = scmp.eq.s32.totalorder %s18, 3
      %p64 = por %p62, %p63
      %p65 = scmp.ne.s32.totalorder %s56, %s57
      %p66 = scmp.eq.s32.totalorder %s18, 0
      %p67 = por %p65, %p66
      %p68 = scmp.ne.s32.totalorder %s56, %s57
      %p69 = scmp.eq.s32.totalorder %s19, 3
      %p70 = por %p68, %p69
      %p72 = scmp.ne.s32.totalorder %s57, %s71
      %p73 = scmp.eq.s32.totalorder %s19, 0
      %p74 = por %p72, %p73
      %s76 = sadd.s32 %s75, 1
      %p79 = scmp.eq.s32.totalorder %s13, 3
      %p80 = scmp.ne.s32.totalorder %s75, %s77
      %p81 = scmp.eq.s32.totalorder %s13, 0
      %p82 = por %p80, %p81
      %p83 = scmp.ne.s32.totalorder %s75, %s77
      %p84 = scmp.eq.s32.totalorder %s18, 3
      %p85 = por %p83, %p84
      %p86 = scmp.ne.s32.totalorder %s77, %s78
      %p87 = scmp.eq.s32.totalorder %s18, 0
      %p88 = por %p86, %p87
      %p89 = scmp.ne.s32.totalorder %s77, %s78
      %p90 = scmp.eq.s32.totalorder %s19, 3
      %p91 = por %p89, %p90
      %p93 = scmp.ne.s32.totalorder %s78, %s92
      %p94 = scmp.eq.s32.totalorder %s19, 0
      %p95 = por %p93, %p94
      %s96 = ssub.s32 %s20, %s32
      %s97 = ssub.s32 %s21, %s28
      %s98 = sor.u32 %s96, %s97
      %p99 = scmp.eq.s32.totalorder %s98, 0
      %s101 = sadd.s32 %s100, 1
      %s102 = scalar_select %p99, %s100, %s101
      %p105 = pneg %p99
      %p106 = scmp.eq.s32.totalorder %s13, 3
      %p107 = por %p105, %p106
      %p108 = scmp.ne.s32.totalorder %s100, %s103
      %p109 = scmp.eq.s32.totalorder %s13, 0
      %p110 = por %p108, %p109
      %p111 = scmp.ne.s32.totalorder %s100, %s103
      %p112 = scmp.eq.s32.totalorder %s18, 3
      %p113 = por %p111, %p112
      %p114 = scmp.ne.s32.totalorder %s103, %s104
      %p115 = scmp.eq.s32.totalorder %s18, 0
      %p116 = por %p114, %p115
      %p117 = scmp.ne.s32.totalorder %s103, %s104
      %p118 = scmp.eq.s32.totalorder %s19, 3
      %p119 = por %p117, %p118
      %p121 = scmp.ne.s32.totalorder %s104, %s120
      %p122 = scmp.eq.s32.totalorder %s19, 0
      %p123 = por %p121, %p122
      %p124 = scmp.le.s32.totalorder 1, %s13
      %p125 = scmp.lt.s32.totalorder %s13, 5
      %p126 = pnand %p124, %p125
      %p127 = pneg %p126
      // Predicated region
      $region9: #{tpu_custom_call.1} parent=5 // pred_check
        _
      $region10: #{tpu_custom_call.1} parent=5 // pred_check_branch
        %129 = sbr.rel (%p126) target = $region12
      $region11: #{tpu_custom_call.1} parent=5 // pred_region
        %s130 = ssub.s32 %s13, 1
        // Predicated region
        $region13: #{tpu_custom_call.1} parent=11 // pred_check
          %p131 = pneg %p46
        $region14: #{tpu_custom_call.1} parent=11 // pred_check_branch
          %133 = sbr.rel (%p131) target = $region16
        $region15: #{tpu_custom_call.1} parent=11 // pred_region
          _
        $region16: #{tpu_custom_call.1} parent=11 // pred_fallthru
          _
        // Predicated region
        $region17: #{tpu_custom_call.1} parent=11 // pred_check
          %p134 = pneg %p67
        $region18: #{tpu_custom_call.1} parent=11 // pred_check_branch
          %136 = sbr.rel (%p134) target = $region20
        $region19: #{tpu_custom_call.1} parent=11 // pred_region
          _
        $region20: #{tpu_custom_call.1} parent=11 // pred_fallthru
          _
        // Predicated region
        $region21: #{tpu_custom_call.1} parent=11 // pred_check
          %p137 = pneg %p88
        $region22: #{tpu_custom_call.1} parent=11 // pred_check_branch
          %139 = sbr.rel (%p137) target = $region24
        $region23: #{tpu_custom_call.1} parent=11 // pred_region
          _
        $region24: #{tpu_custom_call.1} parent=11 // pred_fallthru
          _
      $region12: #{tpu_custom_call.1} parent=5 // pred_fallthru
        _
      %p140 = scmp.lt.s32.totalorder %s13, 4
      // Predicated region
      $region25: #{tpu_custom_call.1} parent=5 // pred_check
        %p141 = pneg %p140
      $region26: #{tpu_custom_call.1} parent=5 // pred_check_branch
        %143 = sbr.rel (%p141) target = $region28
      $region27: #{tpu_custom_call.1} parent=5 // pred_region
        _
      $region28: #{tpu_custom_call.1} parent=5 // pred_fallthru
        _
      %p144 = scmp.le.s32.totalorder 1, %s13
      %p145 = scmp.lt.s32.totalorder %s13, 5
      %p146 = pnand %p144, %p145
      %p147 = pneg %p146
      // Predicated region
      $region29: #{tpu_custom_call.1} parent=5 // pred_check
        _
      $region30: #{tpu_custom_call.1} parent=5 // pred_check_branch
        %149 = sbr.rel (%p146) target = $region32
      $region31: #{tpu_custom_call.1} parent=5 // pred_region
        %s150 = ssub.s32 %s13, 1
        %p151 = pneg %p46
        %p152 = pneg %p43
        %p153 = pneg %p67
        %p154 = pneg %p64
        %p155 = pneg %p88
        %p156 = pneg %p85
        %p157 = pneg %p116
        %p158 = pneg %p113
        %s159 = sand.u32 %s103, 1
        %s160 = scalar_lea.sflag [#allocation5], %s159
        %s161 = sand.u32 %s103, 1
        %s162 = smul.addr %s161, 128
        %s163 = scalar_lea.vmem [#allocation4], %s162
        %s164 = smul.u32 16, %s23
        %p165 = scmp.lt.s32.totalorder %s23, 0
        %s166 = ssub.s32 0, %s23
        %s167 = scalar_select %p165, %s166, %s23
        %s168 = sand.u32 %s167, 1
        %s169 = ssub.s32 0, %s168
        %s170 = scalar_select %p165, %s169, %s168
        %p171 = scmp.ne.s32.totalorder %s170, 0
        %p172 = scmp.lt.s32.totalorder %s170, 0
        %p173 = pnand %p172, %p171
        %p174 = pneg %p173
        %s175 = sadd.s32 %s170, 2
        %s176 = scalar_select %p174, %s175, %s170
        %p177 = scmp.eq.s32.totalorder %s23, 0
        // Predicated region
        $region33: #{tpu_custom_call.1} parent=31 // pred_check
          %p178 = pneg %p177
        $region34: #{tpu_custom_call.1} parent=31 // pred_check_branch
          %180 = sbr.rel (%p178) target = $region36
        $region35: #{tpu_custom_call.1} parent=31 // pred_region
          %s181 = smul.u32 %s23, 8
          %s182 = smul.u32 %s181, 24
          %s183 = smul.u32 %s22, 480
          %s184 = sadd.s32 %s182, %s183
          %s185 = scalar_lea.vmem %s0, %s184
          %s186 = smul.u32 %s176, 288
          %s187 = scalar_lea.vmem [#allocation2], %s186
          %s188 = scalar_lea.sflag [#allocation3], %s176
          %p190 = scmp.lt.u32.totalorder 20, 8
          %p191 = pneg %p190
          // Predicated region
          $region37: #{tpu_custom_call.1} parent=35 // pred_check
            _
          $region38: #{tpu_custom_call.1} parent=35 // pred_check_branch
            %193 = sbr.rel (%p190) target = $region40
          $region39: #{tpu_custom_call.1} parent=35 // pred_region
            %s231 = sand.u32 20, 7
            %p232 = scmp.eq.s32.totalorder %s231, 0
            %p233 = pneg %p232
            // Predicated region
            $region52: #{tpu_custom_call.1} parent=39 // pred_check
              _
            $region53: #{tpu_custom_call.1} parent=39 // pred_check_branch
              %235 = sbr.rel (%p232) target = $region55
            $region54: #{tpu_custom_call.1} parent=39 // pred_region
              %s236 = sand.u32 20, 7
              %s237 = ssub.s32 20, %s236
              %s238 = scalar_lea.vmem %s185, %s237
              %s239 = ssub.s32 20, %s236
              %s240 = scalar_lea.vmem %s187, %s239 [#allocation2]
              loop: start=0, step=1, limit=1
              $region56: #{tpu_custom_call.1} parent=54 // loop_pre_header
                _
              $region57: #{tpu_custom_call.1} parent=54 // loop_header
                %s242 = sphi 0, %s246
                %p243 = scmp.ge.s32.totalorder %s242, 1
                %s247 = sphi %s185, %s185
                %s248 = sphi %s187, %s187
              $region58: #{tpu_custom_call.1} parent=54 // loop_header_branch
                %245 = sbr.rel (%p243) target = $region62
              $region59: #{tpu_custom_call.1} parent=54 // loop_body
                %v249 = vld [vmem:[%s247] sm:$0xff]
                %250 = vst [vmem:[%s248] sm:$0xff] %v249
                %v251 = vld [vmem:[%s247 + $0x8] sm:$0xff]
                %252 = vst [vmem:[%s248 + $0x8] sm:$0xff] %v251
                %v253 = vld [vmem:[%s247 + $0x18] sm:$0xff]
                %254 = vst [vmem:[%s248 + $0x18] sm:$0xff] %v253
                %v255 = vld [vmem:[%s247 + $0x20] sm:$0xff]
                %256 = vst [vmem:[%s248 + $0x20] sm:$0xff] %v255
                %v257 = vld [vmem:[%s247 + $0x30] sm:$0xff]
                %258 = vst [vmem:[%s248 + $0x30] sm:$0xff] %v257
                %v259 = vld [vmem:[%s247 + $0x38] sm:$0xff]
                %260 = vst [vmem:[%s248 + $0x38] sm:$0xff] %v259
                %v261 = vld [vmem:[%s247 + $0x48] sm:$0xff]
                %262 = vst [vmem:[%s248 + $0x48] sm:$0xff] %v261
                %v263 = vld [vmem:[%s247 + $0x50] sm:$0xff]
                %264 = vst [vmem:[%s248 + $0x50] sm:$0xff] %v263
                %v265 = vld [vmem:[%s247 + $0x60] sm:$0xff]
                %266 = vst [vmem:[%s248 + $0x60] sm:$0xff] %v265
                %v267 = vld [vmem:[%s247 + $0x68] sm:$0xff]
                %268 = vst [vmem:[%s248 + $0x68] sm:$0xff] %v267
                %v269 = vld [vmem:[%s247 + $0x78] sm:$0xff]
                %270 = vst [vmem:[%s248 + $0x78] sm:$0xff] %v269
                %v271 = vld [vmem:[%s247 + $0x80] sm:$0xff]
                %272 = vst [vmem:[%s248 + $0x80] sm:$0xff] %v271
                %v273 = vld [vmem:[%s247 + $0x90] sm:$0xff]
                %274 = vst [vmem:[%s248 + $0x90] sm:$0xff] %v273
                %v275 = vld [vmem:[%s247 + $0x98] sm:$0xff]
                %276 = vst [vmem:[%s248 + $0x98] sm:$0xff] %v275
                %v277 = vld [vmem:[%s247 + $0xa8] sm:$0xff]
                %278 = vst [vmem:[%s248 + $0xa8] sm:$0xff] %v277
                %v279 = vld [vmem:[%s247 + $0xb0] sm:$0xff]
                %280 = vst [vmem:[%s248 + $0xb0] sm:$0xff] %v279
                %v281 = vld [vmem:[%s247 + $0xc0] sm:$0xff]
                %282 = vst [vmem:[%s248 + $0xc0] sm:$0xff] %v281
                %v283 = vld [vmem:[%s247 + $0xc8] sm:$0xff]
                %284 = vst [vmem:[%s248 + $0xc8] sm:$0xff] %v283
                %v285 = vld [vmem:[%s247 + $0xd8] sm:$0xff]
                %286 = vst [vmem:[%s248 + $0xd8] sm:$0xff] %v285
                %v287 = vld [vmem:[%s247 + $0xe0] sm:$0xff]
                %288 = vst [vmem:[%s248 + $0xe0] sm:$0xff] %v287
                %v289 = vld [vmem:[%s247 + $0xf0] sm:$0xff]
                %290 = vst [vmem:[%s248 + $0xf0] sm:$0xff] %v289
                %v291 = vld [vmem:[%s247 + $0xf8] sm:$0xff]
                %292 = vst [vmem:[%s248 + $0xf8] sm:$0xff] %v291
                %v293 = vld [vmem:[%s247 + $0x108] sm:$0xff]
                %294 = vst [vmem:[%s248 + $0x108] sm:$0xff] %v293
                %v295 = vld [vmem:[%s247 + $0x110] sm:$0xff]
                %296 = vst [vmem:[%s248 + $0x110] sm:$0xff] %v295
              $region60: #{tpu_custom_call.1} parent=54 // loop_footer
                %s246 = sadd.s32 1, %s242
              $region61: #{tpu_custom_call.1} parent=54 // loop_footer_branch
                %241 = sbr.rel target = $region57
              $region62: #{tpu_custom_call.1} parent=54 // loop_exit
                _
              %s297 = sshll.u32 1, %s236
              %s298 = ssub.s32 %s297, 1
              loop: start=0, step=1, limit=1
              $region63: #{tpu_custom_call.1} parent=54 // loop_pre_header
                _
              $region64: #{tpu_custom_call.1} parent=54 // loop_header
                %s300 = sphi 0, %s304
                %p301 = scmp.ge.s32.totalorder %s300, 1
                %s305 = sphi %s238, %s238
                %s306 = sphi %s240, %s240
              $region65: #{tpu_custom_call.1} parent=54 // loop_header_branch
                %303 = sbr.rel (%p301) target = $region69
              $region66: #{tpu_custom_call.1} parent=54 // loop_body
                %v307 = vld [vmem:[%s305] sm:%s298]
                %308 = vst [vmem:[%s306] sm:%s298] %v307
                %v309 = vld [vmem:[%s305 + $0x18] sm:%s298]
                %310 = vst [vmem:[%s306 + $0x18] sm:%s298] %v309
                %v311 = vld [vmem:[%s305 + $0x30] sm:%s298]
                %312 = vst [vmem:[%s306 + $0x30] sm:%s298] %v311
                %v313 = vld [vmem:[%s305 + $0x48] sm:%s298]
                %314 = vst [vmem:[%s306 + $0x48] sm:%s298] %v313
                %v315 = vld [vmem:[%s305 + $0x60] sm:%s298]
                %316 = vst [vmem:[%s306 + $0x60] sm:%s298] %v315
                %v317 = vld [vmem:[%s305 + $0x78] sm:%s298]
                %318 = vst [vmem:[%s306 + $0x78] sm:%s298] %v317
                %v319 = vld [vmem:[%s305 + $0x90] sm:%s298]
                %320 = vst [vmem:[%s306 + $0x90] sm:%s298] %v319
                %v321 = vld [vmem:[%s305 + $0xa8] sm:%s298]
                %322 = vst [vmem:[%s306 + $0xa8] sm:%s298] %v321
                %v323 = vld [vmem:[%s305 + $0xc0] sm:%s298]
                %324 = vst [vmem:[%s306 + $0xc0] sm:%s298] %v323
                %v325 = vld [vmem:[%s305 + $0xd8] sm:%s298]
                %326 = vst [vmem:[%s306 + $0xd8] sm:%s298] %v325
                %v327 = vld [vmem:[%s305 + $0xf0] sm:%s298]
                %328 = vst [vmem:[%s306 + $0xf0] sm:%s298] %v327
                %v329 = vld [vmem:[%s305 + $0x108] sm:%s298]
                %330 = vst [vmem:[%s306 + $0x108] sm:%s298] %v329
              $region67: #{tpu_custom_call.1} parent=54 // loop_footer
                %s304 = sadd.s32 1, %s300
              $region68: #{tpu_custom_call.1} parent=54 // loop_footer_branch
                %299 = sbr.rel target = $region64
              $region69: #{tpu_custom_call.1} parent=54 // loop_exit
                _
            $region55: #{tpu_custom_call.1} parent=39 // pred_fallthru
              _
          $region40: #{tpu_custom_call.1} parent=35 // pred_fallthru
            _
          // Predicated region
          $region41: #{tpu_custom_call.1} parent=35 // pred_check
            %p194 = pneg %p190
          $region42: #{tpu_custom_call.1} parent=35 // pred_check_branch
            %196 = sbr.rel (%p194) target = $region44
          $region43: #{tpu_custom_call.1} parent=35 // pred_region
            %s197 = sshll.u32 1, 20
            %s198 = ssub.s32 %s197, 1
            loop: start=0, step=1, limit=1
            $region45: #{tpu_custom_call.1} parent=43 // loop_pre_header
              _
            $region46: #{tpu_custom_call.1} parent=43 // loop_header
              %s200 = sphi 0, %s204
              %p201 = scmp.ge.s32.totalorder %s200, 1
              %s205 = sphi %s185, %s185
              %s206 = sphi %s187, %s187
            $region47: #{tpu_custom_call.1} parent=43 // loop_header_branch
              %203 = sbr.rel (%p201) target = $region51
            $region48: #{tpu_custom_call.1} parent=43 // loop_body
              %v207 = vld [vmem:[%s205] sm:%s198]
              %208 = vst [vmem:[%s206] sm:%s198] %v207
              %v209 = vld [vmem:[%s205 + $0x18] sm:%s198]
              %210 = vst [vmem:[%s206 + $0x18] sm:%s198] %v209
              %v211 = vld [vmem:[%s205 + $0x30] sm:%s198]
              %212 = vst [vmem:[%s206 + $0x30] sm:%s198] %v211
              %v213 = vld [vmem:[%s205 + $0x48] sm:%s198]
              %214 = vst [vmem:[%s206 + $0x48] sm:%s198] %v213
              %v215 = vld [vmem:[%s205 + $0x60] sm:%s198]
              %216 = vst [vmem:[%s206 + $0x60] sm:%s198] %v215
              %v217 = vld [vmem:[%s205 + $0x78] sm:%s198]
              %218 = vst [vmem:[%s206 + $0x78] sm:%s198] %v217
              %v219 = vld [vmem:[%s205 + $0x90] sm:%s198]
              %220 = vst [vmem:[%s206 + $0x90] sm:%s198] %v219
              %v221 = vld [vmem:[%s205 + $0xa8] sm:%s198]
              %222 = vst [vmem:[%s206 + $0xa8] sm:%s198] %v221
              %v223 = vld [vmem:[%s205 + $0xc0] sm:%s198]
              %224 = vst [vmem:[%s206 + $0xc0] sm:%s198] %v223
              %v225 = vld [vmem:[%s205 + $0xd8] sm:%s198]
              %226 = vst [vmem:[%s206 + $0xd8] sm:%s198] %v225
              %v227 = vld [vmem:[%s205 + $0xf0] sm:%s198]
              %228 = vst [vmem:[%s206 + $0xf0] sm:%s198] %v227
              %v229 = vld [vmem:[%s205 + $0x108] sm:%s198]
              %230 = vst [vmem:[%s206 + $0x108] sm:%s198] %v229
            $region49: #{tpu_custom_call.1} parent=43 // loop_footer
              %s204 = sadd.s32 1, %s200
            $region50: #{tpu_custom_call.1} parent=43 // loop_footer_branch
              %199 = sbr.rel target = $region46
            $region51: #{tpu_custom_call.1} parent=43 // loop_exit
              _
          $region44: #{tpu_custom_call.1} parent=35 // pred_fallthru
            _
          // Predicated region
          $region70: #{tpu_custom_call.1} parent=35 // pred_check
            _
          $region71: #{tpu_custom_call.1} parent=35 // pred_check_branch
            %333 = sbr.rel (0) target = $region73
          $region72: #{tpu_custom_call.1} parent=35 // pred_region
            %334 = vsyncadd %s188, 3840
          $region73: #{tpu_custom_call.1} parent=35 // pred_fallthru
            _
        $region36: #{tpu_custom_call.1} parent=31 // pred_fallthru
          _
        %s335 = scalar_lea.sflag [#allocation3], %s176
        %s336 = smul.u32 12, 20
        %s337 = smul.u32 %s336, 1
        %s338 = sshll.u32 %s337, 4
        %339 = dma.done %s335, %s338
        %s340 = sadd.s32 %s23, 1
        %p341 = scmp.lt.s32.totalorder %s340, 2
        // Predicated region
        $region74: #{tpu_custom_call.1} parent=31 // pred_check
          %p342 = pneg %p341
        $region75: #{tpu_custom_call.1} parent=31 // pred_check_branch
          %344 = sbr.rel (%p342) target = $region77
        $region76: #{tpu_custom_call.1} parent=31 // pred_region
          %s345 = ssub.s32 1, %s176
          %s346 = smul.u32 %s340, 8
          %s347 = smul.u32 %s346, 24
          %s348 = smul.u32 %s22, 480
          %s349 = sadd.s32 %s347, %s348
          %s350 = scalar_lea.vmem %s0, %s349
          %s351 = smul.u32 %s345, 288
          %s352 = scalar_lea.vmem [#allocation2], %s351
          %s353 = scalar_lea.sflag [#allocation3], %s345
          %p355 = scmp.lt.u32.totalorder 20, 8
          %p356 = pneg %p355
          // Predicated region
          $region78: #{tpu_custom_call.1} parent=76 // pred_check
            _
          $region79: #{tpu_custom_call.1} parent=76 // pred_check_branch
            %358 = sbr.rel (%p355) target = $region81
          $region80: #{tpu_custom_call.1} parent=76 // pred_region
            %s396 = sand.u32 20, 7
            %p397 = scmp.eq.s32.totalorder %s396, 0
            %p398 = pneg %p397
            // Predicated region
            $region93: #{tpu_custom_call.1} parent=80 // pred_check
              _
            $region94: #{tpu_custom_call.1} parent=80 // pred_check_branch
              %400 = sbr.rel (%p397) target = $region96
            $region95: #{tpu_custom_call.1} parent=80 // pred_region
              %s401 = sand.u32 20, 7
              %s402 = ssub.s32 20, %s401
              %s403 = scalar_lea.vmem %s350, %s402
              %s404 = ssub.s32 20, %s401
              %s405 = scalar_lea.vmem %s352, %s404 [#allocation2]
              loop: start=0, step=1, limit=1
              $region97: #{tpu_custom_call.1} parent=95 // loop_pre_header
                _
              $region98: #{tpu_custom_call.1} parent=95 // loop_header
                %s407 = sphi 0, %s411
                %p408 = scmp.ge.s32.totalorder %s407, 1
                %s412 = sphi %s350, %s350
                %s413 = sphi %s352, %s352
              $region99: #{tpu_custom_call.1} parent=95 // loop_header_branch
                %410 = sbr.rel (%p408) target = $region103
              $region100: #{tpu_custom_call.1} parent=95 // loop_body
                %v414 = vld [vmem:[%s412] sm:$0xff]
                %415 = vst [vmem:[%s413] sm:$0xff] %v414
                %v416 = vld [vmem:[%s412 + $0x8] sm:$0xff]
                %417 = vst [vmem:[%s413 + $0x8] sm:$0xff] %v416
                %v418 = vld [vmem:[%s412 + $0x18] sm:$0xff]
                %419 = vst [vmem:[%s413 + $0x18] sm:$0xff] %v418
                %v420 = vld [vmem:[%s412 + $0x20] sm:$0xff]
                %421 = vst [vmem:[%s413 + $0x20] sm:$0xff] %v420
                %v422 = vld [vmem:[%s412 + $0x30] sm:$0xff]
                %423 = vst [vmem:[%s413 + $0x30] sm:$0xff] %v422
                %v424 = vld [vmem:[%s412 + $0x38] sm:$0xff]
                %425 = vst [vmem:[%s413 + $0x38] sm:$0xff] %v424
                %v426 = vld [vmem:[%s412 + $0x48] sm:$0xff]
                %427 = vst [vmem:[%s413 + $0x48] sm:$0xff] %v426
                %v428 = vld [vmem:[%s412 + $0x50] sm:$0xff]
                %429 = vst [vmem:[%s413 + $0x50] sm:$0xff] %v428
                %v430 = vld [vmem:[%s412 + $0x60] sm:$0xff]
                %431 = vst [vmem:[%s413 + $0x60] sm:$0xff] %v430
                %v432 = vld [vmem:[%s412 + $0x68] sm:$0xff]
                %433 = vst [vmem:[%s413 + $0x68] sm:$0xff] %v432
                %v434 = vld [vmem:[%s412 + $0x78] sm:$0xff]
                %435 = vst [vmem:[%s413 + $0x78] sm:$0xff] %v434
                %v436 = vld [vmem:[%s412 + $0x80] sm:$0xff]
                %437 = vst [vmem:[%s413 + $0x80] sm:$0xff] %v436
                %v438 = vld [vmem:[%s412 + $0x90] sm:$0xff]
                %439 = vst [vmem:[%s413 + $0x90] sm:$0xff] %v438
                %v440 = vld [vmem:[%s412 + $0x98] sm:$0xff]
                %441 = vst [vmem:[%s413 + $0x98] sm:$0xff] %v440
                %v442 = vld [vmem:[%s412 + $0xa8] sm:$0xff]
                %443 = vst [vmem:[%s413 + $0xa8] sm:$0xff] %v442
                %v444 = vld [vmem:[%s412 + $0xb0] sm:$0xff]
                %445 = vst [vmem:[%s413 + $0xb0] sm:$0xff] %v444
                %v446 = vld [vmem:[%s412 + $0xc0] sm:$0xff]
                %447 = vst [vmem:[%s413 + $0xc0] sm:$0xff] %v446
                %v448 = vld [vmem:[%s412 + $0xc8] sm:$0xff]
                %449 = vst [vmem:[%s413 + $0xc8] sm:$0xff] %v448
                %v450 = vld [vmem:[%s412 + $0xd8] sm:$0xff]
                %451 = vst [vmem:[%s413 + $0xd8] sm:$0xff] %v450
                %v452 = vld [vmem:[%s412 + $0xe0] sm:$0xff]
                %453 = vst [vmem:[%s413 + $0xe0] sm:$0xff] %v452
                %v454 = vld [vmem:[%s412 + $0xf0] sm:$0xff]
                %455 = vst [vmem:[%s413 + $0xf0] sm:$0xff] %v454
                %v456 = vld [vmem:[%s412 + $0xf8] sm:$0xff]
                %457 = vst [vmem:[%s413 + $0xf8] sm:$0xff] %v456
                %v458 = vld [vmem:[%s412 + $0x108] sm:$0xff]
                %459 = vst [vmem:[%s413 + $0x108] sm:$0xff] %v458
                %v460 = vld [vmem:[%s412 + $0x110] sm:$0xff]
                %461 = vst [vmem:[%s413 + $0x110] sm:$0xff] %v460
              $region101: #{tpu_custom_call.1} parent=95 // loop_footer
                %s411 = sadd.s32 1, %s407
              $region102: #{tpu_custom_call.1} parent=95 // loop_footer_branch
                %406 = sbr.rel target = $region98
              $region103: #{tpu_custom_call.1} parent=95 // loop_exit
                _
              %s462 = sshll.u32 1, %s401
              %s463 = ssub.s32 %s462, 1
              loop: start=0, step=1, limit=1
              $region104: #{tpu_custom_call.1} parent=95 // loop_pre_header
                _
              $region105: #{tpu_custom_call.1} parent=95 // loop_header
                %s465 = sphi 0, %s469
                %p466 = scmp.ge.s32.totalorder %s465, 1
                %s470 = sphi %s403, %s403
                %s471 = sphi %s405, %s405
              $region106: #{tpu_custom_call.1} parent=95 // loop_header_branch
                %468 = sbr.rel (%p466) target = $region110
              $region107: #{tpu_custom_call.1} parent=95 // loop_body
                %v472 = vld [vmem:[%s470] sm:%s463]
                %473 = vst [vmem:[%s471] sm:%s463] %v472
                %v474 = vld [vmem:[%s470 + $0x18] sm:%s463]
                %475 = vst [vmem:[%s471 + $0x18] sm:%s463] %v474
                %v476 = vld [vmem:[%s470 + $0x30] sm:%s463]
                %477 = vst [vmem:[%s471 + $0x30] sm:%s463] %v476
                %v478 = vld [vmem:[%s470 + $0x48] sm:%s463]
                %479 = vst [vmem:[%s471 + $0x48] sm:%s463] %v478
                %v480 = vld [vmem:[%s470 + $0x60] sm:%s463]
                %481 = vst [vmem:[%s471 + $0x60] sm:%s463] %v480
                %v482 = vld [vmem:[%s470 + $0x78] sm:%s463]
                %483 = vst [vmem:[%s471 + $0x78] sm:%s463] %v482
                %v484 = vld [vmem:[%s470 + $0x90] sm:%s463]
                %485 = vst [vmem:[%s471 + $0x90] sm:%s463] %v484
                %v486 = vld [vmem:[%s470 + $0xa8] sm:%s463]
                %487 = vst [vmem:[%s471 + $0xa8] sm:%s463] %v486
                %v488 = vld [vmem:[%s470 + $0xc0] sm:%s463]
                %489 = vst [vmem:[%s471 + $0xc0] sm:%s463] %v488
                %v490 = vld [vmem:[%s470 + $0xd8] sm:%s463]
                %491 = vst [vmem:[%s471 + $0xd8] sm:%s463] %v490
                %v492 = vld [vmem:[%s470 + $0xf0] sm:%s463]
                %493 = vst [vmem:[%s471 + $0xf0] sm:%s463] %v492
                %v494 = vld [vmem:[%s470 + $0x108] sm:%s463]
                %495 = vst [vmem:[%s471 + $0x108] sm:%s463] %v494
              $region108: #{tpu_custom_call.1} parent=95 // loop_footer
                %s469 = sadd.s32 1, %s465
              $region109: #{tpu_custom_call.1} parent=95 // loop_footer_branch
                %464 = sbr.rel target = $region105
              $region110: #{tpu_custom_call.1} parent=95 // loop_exit
                _
            $region96: #{tpu_custom_call.1} parent=80 // pred_fallthru
              _
          $region81: #{tpu_custom_call.1} parent=76 // pred_fallthru
            _
          // Predicated region
          $region82: #{tpu_custom_call.1} parent=76 // pred_check
            %p359 = pneg %p355
          $region83: #{tpu_custom_call.1} parent=76 // pred_check_branch
            %361 = sbr.rel (%p359) target = $region85
          $region84: #{tpu_custom_call.1} parent=76 // pred_region
            %s362 = sshll.u32 1, 20
            %s363 = ssub.s32 %s362, 1
            loop: start=0, step=1, limit=1
            $region86: #{tpu_custom_call.1} parent=84 // loop_pre_header
              _
            $region87: #{tpu_custom_call.1} parent=84 // loop_header
              %s365 = sphi 0, %s369
              %p366 = scmp.ge.s32.totalorder %s365, 1
              %s370 = sphi %s350, %s350
              %s371 = sphi %s352, %s352
            $region88: #{tpu_custom_call.1} parent=84 // loop_header_branch
              %368 = sbr.rel (%p366) target = $region92
            $region89: #{tpu_custom_call.1} parent=84 // loop_body
              %v372 = vld [vmem:[%s370] sm:%s363]
              %373 = vst [vmem:[%s371] sm:%s363] %v372
              %v374 = vld [vmem:[%s370 + $0x18] sm:%s363]
              %375 = vst [vmem:[%s371 + $0x18] sm:%s363] %v374
              %v376 = vld [vmem:[%s370 + $0x30] sm:%s363]
              %377 = vst [vmem:[%s371 + $0x30] sm:%s363] %v376
              %v378 = vld [vmem:[%s370 + $0x48] sm:%s363]
              %379 = vst [vmem:[%s371 + $0x48] sm:%s363] %v378
              %v380 = vld [vmem:[%s370 + $0x60] sm:%s363]
              %381 = vst [vmem:[%s371 + $0x60] sm:%s363] %v380
              %v382 = vld [vmem:[%s370 + $0x78] sm:%s363]
              %383 = vst [vmem:[%s371 + $0x78] sm:%s363] %v382
              %v384 = vld [vmem:[%s370 + $0x90] sm:%s363]
              %385 = vst [vmem:[%s371 + $0x90] sm:%s363] %v384
              %v386 = vld [vmem:[%s370 + $0xa8] sm:%s363]
              %387 = vst [vmem:[%s371 + $0xa8] sm:%s363] %v386
              %v388 = vld [vmem:[%s370 + $0xc0] sm:%s363]
              %389 = vst [vmem:[%s371 + $0xc0] sm:%s363] %v388
              %v390 = vld [vmem:[%s370 + $0xd8] sm:%s363]
              %391 = vst [vmem:[%s371 + $0xd8] sm:%s363] %v390
              %v392 = vld [vmem:[%s370 + $0xf0] sm:%s363]
              %393 = vst [vmem:[%s371 + $0xf0] sm:%s363] %v392
              %v394 = vld [vmem:[%s370 + $0x108] sm:%s363]
              %395 = vst [vmem:[%s371 + $0x108] sm:%s363] %v394
            $region90: #{tpu_custom_call.1} parent=84 // loop_footer
              %s369 = sadd.s32 1, %s365
            $region91: #{tpu_custom_call.1} parent=84 // loop_footer_branch
              %364 = sbr.rel target = $region87
            $region92: #{tpu_custom_call.1} parent=84 // loop_exit
              _
          $region85: #{tpu_custom_call.1} parent=76 // pred_fallthru
            _
          // Predicated region
          $region111: #{tpu_custom_call.1} parent=76 // pred_check
            _
          $region112: #{tpu_custom_call.1} parent=76 // pred_check_branch
            %498 = sbr.rel (0) target = $region114
          $region113: #{tpu_custom_call.1} parent=76 // pred_region
            %499 = vsyncadd %s353, 3840
          $region114: #{tpu_custom_call.1} parent=76 // pred_fallthru
            _
        $region77: #{tpu_custom_call.1} parent=31 // pred_fallthru
          _
        %v500 = vld [vmem:[%s1] sm:$0x7]
        %v501 = vld [vmem:[%s1 + $0x4] sm:$0x7]
        %v502 = vld [vmem:[%s1 + $0x8] sm:$0x7]
        %s503 = smul.u32 %s176, 288
        %s504 = scalar_lea.vmem [#allocation2], %s503
        %v505 = vld [vmem:[%s504] sm:$0xff]
        %v506 = vld [vmem:[%s504 + $0x8] sm:$0xff]
        %v507 = vld [vmem:[%s504 + $0x18] sm:$0xff]
        %v508 = vld [vmem:[%s504 + $0x20] sm:$0xff]
        %v509 = vld [vmem:[%s504 + $0x30] sm:$0xff]
        %v510 = vld [vmem:[%s504 + $0x38] sm:$0xff]
        %v511 = vld [vmem:[%s504 + $0x48] sm:$0xff]
        %v512 = vld [vmem:[%s504 + $0x50] sm:$0xff]
        %v513 = vld [vmem:[%s504 + $0x60] sm:$0xff]
        %v514 = vld [vmem:[%s504 + $0x68] sm:$0xff]
        %v515 = vld [vmem:[%s504 + $0x78] sm:$0xff]
        %v516 = vld [vmem:[%s504 + $0x80] sm:$0xff]
        %v517 = vld [vmem:[%s504 + $0x90] sm:$0xff]
        %v518 = vld [vmem:[%s504 + $0x98] sm:$0xff]
        %v519 = vld [vmem:[%s504 + $0xa8] sm:$0xff]
        %v520 = vld [vmem:[%s504 + $0xb0] sm:$0xff]
        %v521 = vlaneseq
        %v522 = vshrl.u32 %v521, 7
        %v523 = vsub.s32 0, %v522
        %v524 = vrot.slane %v500, %v523
        %v525 = vmul.f32 %v505, %v524
        %v526 = vmul.f32 %v506, %v524
        %v527 = vmul.f32 %v507, %v524
        %v528 = vmul.f32 %v508, %v524
        %v529 = vmul.f32 %v509, %v524
        %v530 = vmul.f32 %v510, %v524
        %v531 = vmul.f32 %v511, %v524
        %v532 = vmul.f32 %v512, %v524
        %v533 = vmul.f32 %v513, %v524
        %v534 = vmul.f32 %v514, %v524
        %v535 = vmul.f32 %v515, %v524
        %v536 = vmul.f32 %v516, %v524
        %v537 = vmul.f32 %v517, %v524
        %v538 = vmul.f32 %v518, %v524
        %v539 = vmul.f32 %v519, %v524
        %v540 = vmul.f32 %v520, %v524
        %v541 = vadd.f32 %v525, 0.0
        %v542 = vadd.f32 %v526, 0.0
        %v543 = vadd.f32 %v527, 0.0
        %v544 = vadd.f32 %v528, 0.0
        %v545 = vadd.f32 %v529, 0.0
        %v546 = vadd.f32 %v530, 0.0
        %v547 = vadd.f32 %v531, 0.0
        %v548 = vadd.f32 %v532, 0.0
        %v549 = vadd.f32 %v533, 0.0
        %v550 = vadd.f32 %v534, 0.0
        %v551 = vadd.f32 %v535, 0.0
        %v552 = vadd.f32 %v536, 0.0
        %v553 = vadd.f32 %v537, 0.0
        %v554 = vadd.f32 %v538, 0.0
        %v555 = vadd.f32 %v539, 0.0
        %v556 = vadd.f32 %v540, 0.0
        %v557 = vld [vmem:[%s504 + $0x2] sm:$0xff]
        %v558 = vld [vmem:[%s504 + $0xa] sm:$0xff]
        %v559 = vld [vmem:[%s504 + $0x1a] sm:$0xff]
        %v560 = vld [vmem:[%s504 + $0x22] sm:$0xff]
        %v561 = vld [vmem:[%s504 + $0x32] sm:$0xff]
        %v562 = vld [vmem:[%s504 + $0x3a] sm:$0xff]
        %v563 = vld [vmem:[%s504 + $0x4a] sm:$0xff]
        %v564 = vld [vmem:[%s504 + $0x52] sm:$0xff]
        %v565 = vld [vmem:[%s504 + $0x62] sm:$0xff]
        %v566 = vld [vmem:[%s504 + $0x6a] sm:$0xff]
        %v567 = vld [vmem:[%s504 + $0x7a] sm:$0xff]
        %v568 = vld [vmem:[%s504 + $0x82] sm:$0xff]
        %v569 = vld [vmem:[%s504 + $0x92] sm:$0xff]
        %v570 = vld [vmem:[%s504 + $0x9a] sm:$0xff]
        %v571 = vld [vmem:[%s504 + $0xaa] sm:$0xff]
        %v572 = vld [vmem:[%s504 + $0xb2] sm:$0xff]
        %v573 = vlaneseq
        %v574 = vshrl.u32 %v573, 7
        %v575 = vsub.s32 1, %v574
        %v576 = vrot.slane %v500, %v575
        %v577 = vmul.f32 %v557, %v576
        %v578 = vmul.f32 %v558, %v576
        %v579 = vmul.f32 %v559, %v576
        %v580 = vmul.f32 %v560, %v576
        %v581 = vmul.f32 %v561, %v576
        %v582 = vmul.f32 %v562, %v576
        %v583 = vmul.f32 %v563, %v576
        %v584 = vmul.f32 %v564, %v576
        %v585 = vmul.f32 %v565, %v576
        %v586 = vmul.f32 %v566, %v576
        %v587 = vmul.f32 %v567, %v576
        %v588 = vmul.f32 %v568, %v576
        %v589 = vmul.f32 %v569, %v576
        %v590 = vmul.f32 %v570, %v576
        %v591 = vmul.f32 %v571, %v576
        %v592 = vmul.f32 %v572, %v576
        %v593 = vadd.f32 %v541, %v577
        %v594 = vadd.f32 %v542, %v578
        %v595 = vadd.f32 %v543, %v579
        %v596 = vadd.f32 %v544, %v580
        %v597 = vadd.f32 %v545, %v581
        %v598 = vadd.f32 %v546, %v582
        %v599 = vadd.f32 %v547, %v583
        %v600 = vadd.f32 %v548, %v584
        %v601 = vadd.f32 %v549, %v585
        %v602 = vadd.f32 %v550, %v586
        %v603 = vadd.f32 %v551, %v587
        %v604 = vadd.f32 %v552, %v588
        %v605 = vadd.f32 %v553, %v589
        %v606 = vadd.f32 %v554, %v590
        %v607 = vadd.f32 %v555, %v591
        %v608 = vadd.f32 %v556, %v592
        %v609 = vld [vmem:[%s504 + $0x4] sm:$0xff]
        %v610 = vld [vmem:[%s504 + $0xc] sm:$0xff]
        %v611 = vld [vmem:[%s504 + $0x1c] sm:$0xff]
        %v612 = vld [vmem:[%s504 + $0x24] sm:$0xff]
        %v613 = vld [vmem:[%s504 + $0x34] sm:$0xff]
        %v614 = vld [vmem:[%s504 + $0x3c] sm:$0xff]
        %v615 = vld [vmem:[%s504 + $0x4c] sm:$0xff]
        %v616 = vld [vmem:[%s504 + $0x54] sm:$0xff]
        %v617 = vld [vmem:[%s504 + $0x64] sm:$0xff]
        %v618 = vld [vmem:[%s504 + $0x6c] sm:$0xff]
        %v619 = vld [vmem:[%s504 + $0x7c] sm:$0xff]
        %v620 = vld [vmem:[%s504 + $0x84] sm:$0xff]
        %v621 = vld [vmem:[%s504 + $0x94] sm:$0xff]
        %v622 = vld [vmem:[%s504 + $0x9c] sm:$0xff]
        %v623 = vld [vmem:[%s504 + $0xac] sm:$0xff]
        %v624 = vld [vmem:[%s504 + $0xb4] sm:$0xff]
        %v625 = vlaneseq
        %v626 = vshrl.u32 %v625, 7
        %v627 = vsub.s32 2, %v626
        %v628 = vrot.slane %v500, %v627
        %v629 = vmul.f32 %v609, %v628
        %v630 = vmul.f32 %v610, %v628
        %v631 = vmul.f32 %v611, %v628
        %v632 = vmul.f32 %v612, %v628
        %v633 = vmul.f32 %v613, %v628
        %v634 = vmul.f32 %v614, %v628
        %v635 = vmul.f32 %v615, %v628
        %v636 = vmul.f32 %v616, %v628
        %v637 = vmul.f32 %v617, %v628
        %v638 = vmul.f32 %v618, %v628
        %v639 = vmul.f32 %v619, %v628
        %v640 = vmul.f32 %v620, %v628
        %v641 = vmul.f32 %v621, %v628
        %v642 = vmul.f32 %v622, %v628
        %v643 = vmul.f32 %v623, %v628
        %v644 = vmul.f32 %v624, %v628
        %v645 = vadd.f32 %v593, %v629
        %v646 = vadd.f32 %v594, %v630
        %v647 = vadd.f32 %v595, %v631
        %v648 = vadd.f32 %v596, %v632
        %v649 = vadd.f32 %v597, %v633
        %v650 = vadd.f32 %v598, %v634
        %v651 = vadd.f32 %v599, %v635
        %v652 = vadd.f32 %v600, %v636
        %v653 = vadd.f32 %v601, %v637
        %v654 = vadd.f32 %v602, %v638
        %v655 = vadd.f32 %v603, %v639
        %v656 = vadd.f32 %v604, %v640
        %v657 = vadd.f32 %v605, %v641
        %v658 = vadd.f32 %v606, %v642
        %v659 = vadd.f32 %v607, %v643
        %v660 = vadd.f32 %v608, %v644
        %s661 = sadd.s32 48, %s503
        %s662 = scalar_lea.vmem [#allocation2], %s661
        %v663 = vld [vmem:[%s662] sm:$0xff]
        %v664 = vld [vmem:[%s662 + $0x8] sm:$0xff]
        %v665 = vld [vmem:[%s662 + $0x18] sm:$0xff]
        %v666 = vld [vmem:[%s662 + $0x20] sm:$0xff]
        %v667 = vld [vmem:[%s662 + $0x30] sm:$0xff]
        %v668 = vld [vmem:[%s662 + $0x38] sm:$0xff]
        %v669 = vld [vmem:[%s662 + $0x48] sm:$0xff]
        %v670 = vld [vmem:[%s662 + $0x50] sm:$0xff]
        %v671 = vld [vmem:[%s662 + $0x60] sm:$0xff]
        %v672 = vld [vmem:[%s662 + $0x68] sm:$0xff]
        %v673 = vld [vmem:[%s662 + $0x78] sm:$0xff]
        %v674 = vld [vmem:[%s662 + $0x80] sm:$0xff]
        %v675 = vld [vmem:[%s662 + $0x90] sm:$0xff]
        %v676 = vld [vmem:[%s662 + $0x98] sm:$0xff]
        %v677 = vld [vmem:[%s662 + $0xa8] sm:$0xff]
        %v678 = vld [vmem:[%s662 + $0xb0] sm:$0xff]
        %v679 = vlaneseq
        %v680 = vshrl.u32 %v679, 7
        %v681 = vsub.s32 0, %v680
        %v682 = vrot.slane %v501, %v681
        %v683 = vmul.f32 %v663, %v682
        %v684 = vmul.f32 %v664, %v682
        %v685 = vmul.f32 %v665, %v682
        %v686 = vmul.f32 %v666, %v682
        %v687 = vmul.f32 %v667, %v682
        %v688 = vmul.f32 %v668, %v682
        %v689 = vmul.f32 %v669, %v682
        %v690 = vmul.f32 %v670, %v682
        %v691 = vmul.f32 %v671, %v682
        %v692 = vmul.f32 %v672, %v682
        %v693 = vmul.f32 %v673, %v682
        %v694 = vmul.f32 %v674, %v682
        %v695 = vmul.f32 %v675, %v682
        %v696 = vmul.f32 %v676, %v682
        %v697 = vmul.f32 %v677, %v682
        %v698 = vmul.f32 %v678, %v682
        %v699 = vadd.f32 %v645, %v683
        %v700 = vadd.f32 %v646, %v684
        %v701 = vadd.f32 %v647, %v685
        %v702 = vadd.f32 %v648, %v686
        %v703 = vadd.f32 %v649, %v687
        %v704 = vadd.f32 %v650, %v688
        %v705 = vadd.f32 %v651, %v689
        %v706 = vadd.f32 %v652, %v690
        %v707 = vadd.f32 %v653, %v691
        %v708 = vadd.f32 %v654, %v692
        %v709 = vadd.f32 %v655, %v693
        %v710 = vadd.f32 %v656, %v694
        %v711 = vadd.f32 %v657, %v695
        %v712 = vadd.f32 %v658, %v696
        %v713 = vadd.f32 %v659, %v697
        %v714 = vadd.f32 %v660, %v698
        %v715 = vld [vmem:[%s662 + $0x2] sm:$0xff]
        %v716 = vld [vmem:[%s662 + $0xa] sm:$0xff]
        %v717 = vld [vmem:[%s662 + $0x1a] sm:$0xff]
        %v718 = vld [vmem:[%s662 + $0x22] sm:$0xff]
        %v719 = vld [vmem:[%s662 + $0x32] sm:$0xff]
        %v720 = vld [vmem:[%s662 + $0x3a] sm:$0xff]
        %v721 = vld [vmem:[%s662 + $0x4a] sm:$0xff]
        %v722 = vld [vmem:[%s662 + $0x52] sm:$0xff]
        %v723 = vld [vmem:[%s662 + $0x62] sm:$0xff]
        %v724 = vld [vmem:[%s662 + $0x6a] sm:$0xff]
        %v725 = vld [vmem:[%s662 + $0x7a] sm:$0xff]
        %v726 = vld [vmem:[%s662 + $0x82] sm:$0xff]
        %v727 = vld [vmem:[%s662 + $0x92] sm:$0xff]
        %v728 = vld [vmem:[%s662 + $0x9a] sm:$0xff]
        %v729 = vld [vmem:[%s662 + $0xaa] sm:$0xff]
        %v730 = vld [vmem:[%s662 + $0xb2] sm:$0xff]
        %v731 = vlaneseq
        %v732 = vshrl.u32 %v731, 7
        %v733 = vsub.s32 1, %v732
        %v734 = vrot.slane %v501, %v733
        %v735 = vmul.f32 %v715, %v734
        %v736 = vmul.f32 %v716, %v734
        %v737 = vmul.f32 %v717, %v734
        %v738 = vmul.f32 %v718, %v734
        %v739 = vmul.f32 %v719, %v734
        %v740 = vmul.f32 %v720, %v734
        %v741 = vmul.f32 %v721, %v734
        %v742 = vmul.f32 %v722, %v734
        %v743 = vmul.f32 %v723, %v734
        %v744 = vmul.f32 %v724, %v734
        %v745 = vmul.f32 %v725, %v734
        %v746 = vmul.f32 %v726, %v734
        %v747 = vmul.f32 %v727, %v734
        %v748 = vmul.f32 %v728, %v734
        %v749 = vmul.f32 %v729, %v734
        %v750 = vmul.f32 %v730, %v734
        %v751 = vadd.f32 %v699, %v735
        %v752 = vadd.f32 %v700, %v736
        %v753 = vadd.f32 %v701, %v737
        %v754 = vadd.f32 %v702, %v738
        %v755 = vadd.f32 %v703, %v739
        %v756 = vadd.f32 %v704, %v740
        %v757 = vadd.f32 %v705, %v741
        %v758 = vadd.f32 %v706, %v742
        %v759 = vadd.f32 %v707, %v743
        %v760 = vadd.f32 %v708, %v744
        %v761 = vadd.f32 %v709, %v745
        %v762 = vadd.f32 %v710, %v746
        %v763 = vadd.f32 %v711, %v747
        %v764 = vadd.f32 %v712, %v748
        %v765 = vadd.f32 %v713, %v749
        %v766 = vadd.f32 %v714, %v750
        %v767 = vld [vmem:[%s662 + $0x4] sm:$0xff]
        %v768 = vld [vmem:[%s662 + $0xc] sm:$0xff]
        %v769 = vld [vmem:[%s662 + $0x1c] sm:$0xff]
        %v770 = vld [vmem:[%s662 + $0x24] sm:$0xff]
        %v771 = vld [vmem:[%s662 + $0x34] sm:$0xff]
        %v772 = vld [vmem:[%s662 + $0x3c] sm:$0xff]
        %v773 = vld [vmem:[%s662 + $0x4c] sm:$0xff]
        %v774 = vld [vmem:[%s662 + $0x54] sm:$0xff]
        %v775 = vld [vmem:[%s662 + $0x64] sm:$0xff]
        %v776 = vld [vmem:[%s662 + $0x6c] sm:$0xff]
        %v777 = vld [vmem:[%s662 + $0x7c] sm:$0xff]
        %v778 = vld [vmem:[%s662 + $0x84] sm:$0xff]
        %v779 = vld [vmem:[%s662 + $0x94] sm:$0xff]
        %v780 = vld [vmem:[%s662 + $0x9c] sm:$0xff]
        %v781 = vld [vmem:[%s662 + $0xac] sm:$0xff]
        %v782 = vld [vmem:[%s662 + $0xb4] sm:$0xff]
        %v783 = vlaneseq
        %v784 = vshrl.u32 %v783, 7
        %v785 = vsub.s32 2, %v784
        %v786 = vrot.slane %v501, %v785
        %v787 = vmul.f32 %v767, %v786
        %v788 = vmul.f32 %v768, %v786
        %v789 = vmul.f32 %v769, %v786
        %v790 = vmul.f32 %v770, %v786
        %v791 = vmul.f32 %v771, %v786
        %v792 = vmul.f32 %v772, %v786
        %v793 = vmul.f32 %v773, %v786
        %v794 = vmul.f32 %v774, %v786
        %v795 = vmul.f32 %v775, %v786
        %v796 = vmul.f32 %v776, %v786
        %v797 = vmul.f32 %v777, %v786
        %v798 = vmul.f32 %v778, %v786
        %v799 = vmul.f32 %v779, %v786
        %v800 = vmul.f32 %v780, %v786
        %v801 = vmul.f32 %v781, %v786
        %v802 = vmul.f32 %v782, %v786
        %v803 = vadd.f32 %v751, %v787
        %v804 = vadd.f32 %v752, %v788
        %v805 = vadd.f32 %v753, %v789
        %v806 = vadd.f32 %v754, %v790
        %v807 = vadd.f32 %v755, %v791
        %v808 = vadd.f32 %v756, %v792
        %v809 = vadd.f32 %v757, %v793
        %v810 = vadd.f32 %v758, %v794
        %v811 = vadd.f32 %v759, %v795
        %v812 = vadd.f32 %v760, %v796
        %v813 = vadd.f32 %v761, %v797
        %v814 = vadd.f32 %v762, %v798
        %v815 = vadd.f32 %v763, %v799
        %v816 = vadd.f32 %v764, %v800
        %v817 = vadd.f32 %v765, %v801
        %v818 = vadd.f32 %v766, %v802
        %s819 = sadd.s32 96, %s503
        %s820 = scalar_lea.vmem [#allocation2], %s819
        %v821 = vld [vmem:[%s820] sm:$0xff]
        %v822 = vld [vmem:[%s820 + $0x8] sm:$0xff]
        %v823 = vld [vmem:[%s820 + $0x18] sm:$0xff]
        %v824 = vld [vmem:[%s820 + $0x20] sm:$0xff]
        %v825 = vld [vmem:[%s820 + $0x30] sm:$0xff]
        %v826 = vld [vmem:[%s820 + $0x38] sm:$0xff]
        %v827 = vld [vmem:[%s820 + $0x48] sm:$0xff]
        %v828 = vld [vmem:[%s820 + $0x50] sm:$0xff]
        %v829 = vld [vmem:[%s820 + $0x60] sm:$0xff]
        %v830 = vld [vmem:[%s820 + $0x68] sm:$0xff]
        %v831 = vld [vmem:[%s820 + $0x78] sm:$0xff]
        %v832 = vld [vmem:[%s820 + $0x80] sm:$0xff]
        %v833 = vld [vmem:[%s820 + $0x90] sm:$0xff]
        %v834 = vld [vmem:[%s820 + $0x98] sm:$0xff]
        %v835 = vld [vmem:[%s820 + $0xa8] sm:$0xff]
        %v836 = vld [vmem:[%s820 + $0xb0] sm:$0xff]
        %v837 = vlaneseq
        %v838 = vshrl.u32 %v837, 7
        %v839 = vsub.s32 0, %v838
        %v840 = vrot.slane %v502, %v839
        %v841 = vmul.f32 %v821, %v840
        %v842 = vmul.f32 %v822, %v840
        %v843 = vmul.f32 %v823, %v840
        %v844 = vmul.f32 %v824, %v840
        %v845 = vmul.f32 %v825, %v840
        %v846 = vmul.f32 %v826, %v840
        %v847 = vmul.f32 %v827, %v840
        %v848 = vmul.f32 %v828, %v840
        %v849 = vmul.f32 %v829, %v840
        %v850 = vmul.f32 %v830, %v840
        %v851 = vmul.f32 %v831, %v840
        %v852 = vmul.f32 %v832, %v840
        %v853 = vmul.f32 %v833, %v840
        %v854 = vmul.f32 %v834, %v840
        %v855 = vmul.f32 %v835, %v840
        %v856 = vmul.f32 %v836, %v840
        %v857 = vadd.f32 %v803, %v841
        %v858 = vadd.f32 %v804, %v842
        %v859 = vadd.f32 %v805, %v843
        %v860 = vadd.f32 %v806, %v844
        %v861 = vadd.f32 %v807, %v845
        %v862 = vadd.f32 %v808, %v846
        %v863 = vadd.f32 %v809, %v847
        %v864 = vadd.f32 %v810, %v848
        %v865 = vadd.f32 %v811, %v849
        %v866 = vadd.f32 %v812, %v850
        %v867 = vadd.f32 %v813, %v851
        %v868 = vadd.f32 %v814, %v852
        %v869 = vadd.f32 %v815, %v853
        %v870 = vadd.f32 %v816, %v854
        %v871 = vadd.f32 %v817, %v855
        %v872 = vadd.f32 %v818, %v856
        %v873 = vld [vmem:[%s820 + $0x2] sm:$0xff]
        %v874 = vld [vmem:[%s820 + $0xa] sm:$0xff]
        %v875 = vld [vmem:[%s820 + $0x1a] sm:$0xff]
        %v876 = vld [vmem:[%s820 + $0x22] sm:$0xff]
        %v877 = vld [vmem:[%s820 + $0x32] sm:$0xff]
        %v878 = vld [vmem:[%s820 + $0x3a] sm:$0xff]
        %v879 = vld [vmem:[%s820 + $0x4a] sm:$0xff]
        %v880 = vld [vmem:[%s820 + $0x52] sm:$0xff]
        %v881 = vld [vmem:[%s820 + $0x62] sm:$0xff]
        %v882 = vld [vmem:[%s820 + $0x6a] sm:$0xff]
        %v883 = vld [vmem:[%s820 + $0x7a] sm:$0xff]
        %v884 = vld [vmem:[%s820 + $0x82] sm:$0xff]
        %v885 = vld [vmem:[%s820 + $0x92] sm:$0xff]
        %v886 = vld [vmem:[%s820 + $0x9a] sm:$0xff]
        %v887 = vld [vmem:[%s820 + $0xaa] sm:$0xff]
        %v888 = vld [vmem:[%s820 + $0xb2] sm:$0xff]
        %v889 = vlaneseq
        %v890 = vshrl.u32 %v889, 7
        %v891 = vsub.s32 1, %v890
        %v892 = vrot.slane %v502, %v891
        %v893 = vmul.f32 %v873, %v892
        %v894 = vmul.f32 %v874, %v892
        %v895 = vmul.f32 %v875, %v892
        %v896 = vmul.f32 %v876, %v892
        %v897 = vmul.f32 %v877, %v892
        %v898 = vmul.f32 %v878, %v892
        %v899 = vmul.f32 %v879, %v892
        %v900 = vmul.f32 %v880, %v892
        %v901 = vmul.f32 %v881, %v892
        %v902 = vmul.f32 %v882, %v892
        %v903 = vmul.f32 %v883, %v892
        %v904 = vmul.f32 %v884, %v892
        %v905 = vmul.f32 %v885, %v892
        %v906 = vmul.f32 %v886, %v892
        %v907 = vmul.f32 %v887, %v892
        %v908 = vmul.f32 %v888, %v892
        %v909 = vadd.f32 %v857, %v893
        %v910 = vadd.f32 %v858, %v894
        %v911 = vadd.f32 %v859, %v895
        %v912 = vadd.f32 %v860, %v896
        %v913 = vadd.f32 %v861, %v897
        %v914 = vadd.f32 %v862, %v898
        %v915 = vadd.f32 %v863, %v899
        %v916 = vadd.f32 %v864, %v900
        %v917 = vadd.f32 %v865, %v901
        %v918 = vadd.f32 %v866, %v902
        %v919 = vadd.f32 %v867, %v903
        %v920 = vadd.f32 %v868, %v904
        %v921 = vadd.f32 %v869, %v905
        %v922 = vadd.f32 %v870, %v906
        %v923 = vadd.f32 %v871, %v907
        %v924 = vadd.f32 %v872, %v908
        %v925 = vld [vmem:[%s820 + $0x4] sm:$0xff]
        %v926 = vld [vmem:[%s820 + $0xc] sm:$0xff]
        %v927 = vld [vmem:[%s820 + $0x1c] sm:$0xff]
        %v928 = vld [vmem:[%s820 + $0x24] sm:$0xff]
        %v929 = vld [vmem:[%s820 + $0x34] sm:$0xff]
        %v930 = vld [vmem:[%s820 + $0x3c] sm:$0xff]
        %v931 = vld [vmem:[%s820 + $0x4c] sm:$0xff]
        %v932 = vld [vmem:[%s820 + $0x54] sm:$0xff]
        %v933 = vld [vmem:[%s820 + $0x64] sm:$0xff]
        %v934 = vld [vmem:[%s820 + $0x6c] sm:$0xff]
        %v935 = vld [vmem:[%s820 + $0x7c] sm:$0xff]
        %v936 = vld [vmem:[%s820 + $0x84] sm:$0xff]
        %v937 = vld [vmem:[%s820 + $0x94] sm:$0xff]
        %v938 = vld [vmem:[%s820 + $0x9c] sm:$0xff]
        %v939 = vld [vmem:[%s820 + $0xac] sm:$0xff]
        %v940 = vld [vmem:[%s820 + $0xb4] sm:$0xff]
        %v941 = vlaneseq
        %v942 = vshrl.u32 %v941, 7
        %v943 = vsub.s32 2, %v942
        %v944 = vrot.slane %v502, %v943
        %v945 = vmul.f32 %v925, %v944
        %v946 = vmul.f32 %v926, %v944
        %v947 = vmul.f32 %v927, %v944
        %v948 = vmul.f32 %v928, %v944
        %v949 = vmul.f32 %v929, %v944
        %v950 = vmul.f32 %v930, %v944
        %v951 = vmul.f32 %v931, %v944
        %v952 = vmul.f32 %v932, %v944
        %v953 = vmul.f32 %v933, %v944
        %v954 = vmul.f32 %v934, %v944
        %v955 = vmul.f32 %v935, %v944
        %v956 = vmul.f32 %v936, %v944
        %v957 = vmul.f32 %v937, %v944
        %v958 = vmul.f32 %v938, %v944
        %v959 = vmul.f32 %v939, %v944
        %v960 = vmul.f32 %v940, %v944
        %v961 = vadd.f32 %v909, %v945
        %v962 = vadd.f32 %v910, %v946
        %v963 = vadd.f32 %v911, %v947
        %v964 = vadd.f32 %v912, %v948
        %v965 = vadd.f32 %v913, %v949
        %v966 = vadd.f32 %v914, %v950
        %v967 = vadd.f32 %v915, %v951
        %v968 = vadd.f32 %v916, %v952
        %v969 = vadd.f32 %v917, %v953
        %v970 = vadd.f32 %v918, %v954
        %v971 = vadd.f32 %v919, %v955
        %v972 = vadd.f32 %v920, %v956
        %v973 = vadd.f32 %v921, %v957
        %v974 = vadd.f32 %v922, %v958
        %v975 = vadd.f32 %v923, %v959
        %v976 = vadd.f32 %v924, %v960
        %v977 = vld [vmem:[%s2] sm:$0xff]
        %v978 = vld [vmem:[%s2 + $0x8] sm:$0xff]
        %v979 = vld [vmem:[%s2 + $0x10] sm:$0xff]
        %v980 = vld [vmem:[%s2 + $0x18] sm:$0xff]
        %v981 = vld [vmem:[%s2 + $0x20] sm:$0xff]
        %v982 = vld [vmem:[%s2 + $0x28] sm:$0xff]
        %v983 = vld [vmem:[%s2 + $0x30] sm:$0xff]
        %v984 = vld [vmem:[%s2 + $0x38] sm:$0xff]
        %v985 = vld [vmem:[%s2 + $0x40] sm:$0xff]
        %v986 = vld [vmem:[%s2 + $0x48] sm:$0xff]
        %v987 = vld [vmem:[%s2 + $0x50] sm:$0xff]
        %v988 = vld [vmem:[%s2 + $0x58] sm:$0xff]
        %v989 = vld [vmem:[%s2 + $0x60] sm:$0xff]
        %v990 = vld [vmem:[%s2 + $0x68] sm:$0xff]
        %v991 = vld [vmem:[%s2 + $0x70] sm:$0xff]
        %v992 = vld [vmem:[%s2 + $0x78] sm:$0xff]
        %v993 = vld [vmem:[%s3] sm:$0x1]
        %v995 = vlaneseq
        %v996 = vshrl.u32 %v995, 7
        %v997 = vsub.s32 0, %v996
        %v998 = vrot.slane %v993, %v997
        %1000 = vmatprep.subr.mxu0 0.0
        %1001 = vmatpush1.msra.mxu0 %v992
        %1002 = vmatprep.subr.mxu0 0.0
        %1003 = vmatpush1.msra.mxu0 %v991
        %1004 = vmatprep.subr.mxu0 0.0
        %1005 = vmatpush1.msra.mxu0 %v990
        %1006 = vmatprep.subr.mxu0 0.0
        %1007 = vmatpush1.msra.mxu0 %v989
        %1008 = vmatprep.subr.mxu0 0.0
        %1009 = vmatpush1.msra.mxu0 %v988
        %1010 = vmatprep.subr.mxu0 0.0
        %1011 = vmatpush1.msra.mxu0 %v987
        %1012 = vmatprep.subr.mxu0 0.0
        %1013 = vmatpush1.msra.mxu0 %v986
        %1014 = vmatprep.subr.mxu0 0.0
        %1015 = vmatpush1.msra.mxu0 %v985
        %1016 = vmatprep.subr.mxu0 0.0
        %1017 = vmatpush1.msra.mxu0 %v984
        %1018 = vmatprep.subr.mxu0 0.0
        %1019 = vmatpush1.msra.mxu0 %v983
        %1020 = vmatprep.subr.mxu0 0.0
        %1021 = vmatpush1.msra.mxu0 %v982
        %1022 = vmatprep.subr.mxu0 0.0
        %1023 = vmatpush1.msra.mxu0 %v981
        %1024 = vmatprep.subr.mxu0 0.0
        %1025 = vmatpush1.msra.mxu0 %v980
        %1026 = vmatprep.subr.mxu0 0.0
        %1027 = vmatpush1.msra.mxu0 %v979
        %1028 = vmatprep.subr.mxu0 0.0
        %1029 = vmatpush1.msra.mxu0 %v978
        %1030 = vmatprep.subr.mxu0 0.0
        %1031 = vmatpush1.msra.mxu0 %v977
        %1032 = vmatprep.subr.mxu0 0.0
        %1033 = vmatpush2.msra.mxu0 0.0
        %1034 = vmatprep.subr.mxu0 0.0
        %1035 = vmatpush2.msra.mxu0 0.0
        %1036 = vmatprep.subr.mxu0 0.0
        %1037 = vmatpush2.msra.mxu0 0.0
        %1038 = vmatprep.subr.mxu0 0.0
        %1039 = vmatpush2.msra.mxu0 0.0
        %1040 = vmatprep.subr.mxu0 0.0
        %1041 = vmatpush2.msra.mxu0 0.0
        %1042 = vmatprep.subr.mxu0 0.0
        %1043 = vmatpush2.msra.mxu0 0.0
        %1044 = vmatprep.subr.mxu0 0.0
        %1045 = vmatpush2.msra.mxu0 0.0
        %1046 = vmatprep.subr.mxu0 0.0
        %1047 = vmatpush2.msra.mxu0 0.0
        %1048 = vmatprep.subr.mxu0 0.0
        %1049 = vmatpush2.msra.mxu0 0.0
        %1050 = vmatprep.subr.mxu0 0.0
        %1051 = vmatpush2.msra.mxu0 0.0
        %1052 = vmatprep.subr.mxu0 0.0
        %1053 = vmatpush2.msra.mxu0 0.0
        %1054 = vmatprep.subr.mxu0 0.0
        %1055 = vmatpush2.msra.mxu0 0.0
        %1056 = vmatprep.subr.mxu0 0.0
        %1057 = vmatpush2.msra.mxu0 0.0
        %1058 = vmatprep.subr.mxu0 0.0
        %1059 = vmatpush2.msra.mxu0 0.0
        %1060 = vmatprep.subr.mxu0 0.0
        %1061 = vmatpush2.msra.mxu0 0.0
        %1062 = vmatprep.subr.mxu0 0.0
        %1063 = vmatpush2.msra.mxu0 0.0
        %1064 = vmatprep.mubr.f32.mxu0 0.0
        %1065 = vmatmul.mubr.f32.gmra.mxu0 %v961
        %v1066 = vpop.f32.mrf.mxu0
        %v1067 = vadd.f32 %v998, %v1066
        %v1068 = vpop.f32.mrf.mxu0
        %1069 = vmatprep.mubr.f32.mxu0 0.0
        %1070 = vmatmul.mubr.f32.gmra.mxu0 %v962
        %v1071 = vpop.f32.mrf.mxu0
        %v1072 = vadd.f32 %v998, %v1071
        %v1073 = vpop.f32.mrf.mxu0
        %1074 = vmatprep.mubr.f32.mxu0 0.0
        %1075 = vmatmul.mubr.f32.gmra.mxu0 %v963
        %v1076 = vpop.f32.mrf.mxu0
        %v1077 = vadd.f32 %v998, %v1076
        %v1078 = vpop.f32.mrf.mxu0
        %1079 = vmatprep.mubr.f32.mxu0 0.0
        %1080 = vmatmul.mubr.f32.gmra.mxu0 %v964
        %v1081 = vpop.f32.mrf.mxu0
        %v1082 = vadd.f32 %v998, %v1081
        %v1083 = vpop.f32.mrf.mxu0
        %1084 = vmatprep.mubr.f32.mxu0 0.0
        %1085 = vmatmul.mubr.f32.gmra.mxu0 %v965
        %v1086 = vpop.f32.mrf.mxu0
        %v1087 = vadd.f32 %v998, %v1086
        %v1088 = vpop.f32.mrf.mxu0
        %1089 = vmatprep.mubr.f32.mxu0 0.0
        %1090 = vmatmul.mubr.f32.gmra.mxu0 %v966
        %v1091 = vpop.f32.mrf.mxu0
        %v1092 = vadd.f32 %v998, %v1091
        %v1093 = vpop.f32.mrf.mxu0
        %1094 = vmatprep.mubr.f32.mxu0 0.0
        %1095 = vmatmul.mubr.f32.gmra.mxu0 %v967
        %v1096 = vpop.f32.mrf.mxu0
        %v1097 = vadd.f32 %v998, %v1096
        %v1098 = vpop.f32.mrf.mxu0
        %1099 = vmatprep.mubr.f32.mxu0 0.0
        %1100 = vmatmul.mubr.f32.gmra.mxu0 %v968
        %v1101 = vpop.f32.mrf.mxu0
        %v1102 = vadd.f32 %v998, %v1101
        %v1103 = vpop.f32.mrf.mxu0
        %1104 = vmatprep.mubr.f32.mxu0 0.0
        %1105 = vmatmul.mubr.f32.gmra.mxu0 %v969
        %v1106 = vpop.f32.mrf.mxu0
        %v1107 = vadd.f32 %v998, %v1106
        %v1108 = vpop.f32.mrf.mxu0
        %1109 = vmatprep.mubr.f32.mxu0 0.0
        %1110 = vmatmul.mubr.f32.gmra.mxu0 %v970
        %v1111 = vpop.f32.mrf.mxu0
        %v1112 = vadd.f32 %v998, %v1111
        %v1113 = vpop.f32.mrf.mxu0
        %1114 = vmatprep.mubr.f32.mxu0 0.0
        %1115 = vmatmul.mubr.f32.gmra.mxu0 %v971
        %v1116 = vpop.f32.mrf.mxu0
        %v1117 = vadd.f32 %v998, %v1116
        %v1118 = vpop.f32.mrf.mxu0
        %1119 = vmatprep.mubr.f32.mxu0 0.0
        %1120 = vmatmul.mubr.f32.gmra.mxu0 %v972
        %v1121 = vpop.f32.mrf.mxu0
        %v1122 = vadd.f32 %v998, %v1121
        %v1123 = vpop.f32.mrf.mxu0
        %1124 = vmatprep.mubr.f32.mxu0 0.0
        %1125 = vmatmul.mubr.f32.gmra.mxu0 %v973
        %v1126 = vpop.f32.mrf.mxu0
        %v1127 = vadd.f32 %v998, %v1126
        %v1128 = vpop.f32.mrf.mxu0
        %1129 = vmatprep.mubr.f32.mxu0 0.0
        %1130 = vmatmul.mubr.f32.gmra.mxu0 %v974
        %v1131 = vpop.f32.mrf.mxu0
        %v1132 = vadd.f32 %v998, %v1131
        %v1133 = vpop.f32.mrf.mxu0
        %1134 = vmatprep.mubr.f32.mxu0 0.0
        %1135 = vmatmul.mubr.f32.gmra.mxu0 %v975
        %v1136 = vpop.f32.mrf.mxu0
        %v1137 = vadd.f32 %v998, %v1136
        %v1138 = vpop.f32.mrf.mxu0
        %1139 = vmatprep.mubr.f32.mxu0 0.0
        %1140 = vmatmul.mubr.f32.gmra.mxu0 %v976
        %v1141 = vpop.f32.mrf.mxu0
        %v1142 = vadd.f32 %v998, %v1141
        %v1143 = vpop.f32.mrf.mxu0
        %1144 = vdwg.mxu0
        %1145 = vst [vmem:[%s163] sm:$0xff] %v1067
        %1146 = vst [vmem:[%s163 + $0x8] sm:$0xff] %v1072
        %1147 = vst [vmem:[%s163 + $0x10] sm:$0xff] %v1077
        %1148 = vst [vmem:[%s163 + $0x18] sm:$0xff] %v1082
        %1149 = vst [vmem:[%s163 + $0x20] sm:$0xff] %v1087
        %1150 = vst [vmem:[%s163 + $0x28] sm:$0xff] %v1092
        %1151 = vst [vmem:[%s163 + $0x30] sm:$0xff] %v1097
        %1152 = vst [vmem:[%s163 + $0x38] sm:$0xff] %v1102
        %1153 = vst [vmem:[%s163 + $0x40] sm:$0xff] %v1107
        %1154 = vst [vmem:[%s163 + $0x48] sm:$0xff] %v1112
        %1155 = vst [vmem:[%s163 + $0x50] sm:$0xff] %v1117
        %1156 = vst [vmem:[%s163 + $0x58] sm:$0xff] %v1122
        %1157 = vst [vmem:[%s163 + $0x60] sm:$0xff] %v1127
        %1158 = vst [vmem:[%s163 + $0x68] sm:$0xff] %v1132
        %1159 = vst [vmem:[%s163 + $0x70] sm:$0xff] %v1137
        %1160 = vst [vmem:[%s163 + $0x78] sm:$0xff] %v1142
        %s1161 = sand.u32 %s103, 1
        %s1162 = scalar_lea.sflag [#allocation5], %s1161
        %s1163 = sand.u32 %s103, 1
        %s1164 = smul.addr %s1163, 128
        %s1165 = scalar_lea.vmem [#allocation4], %s1164
        // Predicated region
        $region115: #{tpu_custom_call.1} parent=31 // pred_check
          %p1166 = pneg %p113
        $region116: #{tpu_custom_call.1} parent=31 // pred_check_branch
          %1168 = sbr.rel (%p1166) target = $region118
        $region117: #{tpu_custom_call.1} parent=31 // pred_region
          %s1169 = smul.u32 16, %s23
          %s1171 = ssub.s32 2048, 2048
          %1172 = vsyncadd %s1162, %s1171
          %s1173 = smul.addr %s22, 32
          %s1174 = sadd.s32 %s1169, %s1173
          %s1175 = smul.addr %s1174, 128
          %s1176 = scalar_lea.hbm %s4, %s1175
          %s1177 = sshll.u32 %s1165, 4
          %s1178 = int_to_ptr.vmem [resolvable:$true] %s1177
          %1183 = dma.vmem_to_hbm [thread:$0]  %s1178, 2048, %s1176, %s1162, 128, 128, 8
        $region118: #{tpu_custom_call.1} parent=31 // pred_fallthru
          _
      $region32: #{tpu_custom_call.1} parent=5 // pred_fallthru
        _
      %p1184 = scmp.le.s32.totalorder 2, %s13
      // Predicated region
      $region119: #{tpu_custom_call.1} parent=5 // pred_check
        %p1185 = pneg %p1184
      $region120: #{tpu_custom_call.1} parent=5 // pred_check_branch
        %1187 = sbr.rel (%p1185) target = $region122
      $region121: #{tpu_custom_call.1} parent=5 // pred_region
        %s1188 = ssub.s32 %s13, 2
        // Predicated region
        $region123: #{tpu_custom_call.1} parent=121 // pred_check
          %p1189 = pneg %p119
        $region124: #{tpu_custom_call.1} parent=121 // pred_check_branch
          %1191 = sbr.rel (%p1189) target = $region126
        $region125: #{tpu_custom_call.1} parent=121 // pred_region
          %s1192 = sand.u32 %s104, 1
          %s1193 = scalar_lea.sflag [#allocation5], %s1192
          %s1194 = sand.u32 %s104, 1
          %s1195 = smul.addr %s1194, 128
          %s1196 = scalar_lea.vmem [#allocation4], %s1195
          %1197 = dma.done %s1193, 2048
        $region126: #{tpu_custom_call.1} parent=121 // pred_fallthru
          _
      $region122: #{tpu_custom_call.1} parent=5 // pred_fallthru
        _
    $region6: #{tpu_custom_call.1} parent=1 // loop_footer
      %s17 = sadd.s32 1, %s13
    $region7: #{tpu_custom_call.1} parent=1 // loop_footer_branch
      %12 = sbr.rel target = $region3
    $region8: #{tpu_custom_call.1} parent=1 // loop_exit
      _
    %1198 = vsyncpa [#allocation5], 1
    %s1199 = scalar_lea.sflag [#allocation5], 1
    %1200 = vsyncpa %s1199, 1
  %1201 = vsyncmov [#allocation3]
  %s1202 = vpop.sfrf %1201
  %p1203 = scmp.eq.s32.totalorder %s1202, 0
  %p1204 = pneg %p1203
  %1206 = shalt.err (%p1204)
  %s1207 = scalar_lea.sflag [#allocation3], 1
  %1208 = vsyncmov %s1207
  %s1209 = vpop.sfrf %1208
  %p1210 = scmp.eq.s32.totalorder %s1209, 0
  %p1211 = pneg %p1210
  %1213 = shalt.err (%p1211)

</llo_original>
